<compile_context>
chip_gen: v7x
topology: tpu7x:2x2x1
jax: 0.10.0
libtpu: 0.0.40
codegen_flags: <defaults>
</compile_context>

<pallas_src>
import jax
import jax.numpy as jnp
from jax.experimental import pallas as pl
from jax.experimental.pallas import tpu as pltpu

EPS = 1e-5
NEG_SLOPE = 0.2
LAYER_DIMS = [(64, 512), (512, 256), (256, 128), (128, 256), (256, 512)]


def generator_kernel(z_ref, w1_ref, w2_ref, w3_ref, w4_ref, w5_ref, pk_ref, o_ref):
    """pk_ref rows: 0-3 = gamma(layer1..4), 4-7 = beta(layer1..4), 8 = b5."""
    out_dim = w5_ref.shape[1]

    def matmul(h, w_ref):
        w = w_ref[...]
        if w.dtype != jnp.float32:          # bf16 weights: cast activations at
            h = h.astype(w.dtype)           # the matmul input only
        return jnp.dot(h, w, preferred_element_type=jnp.float32)

    def bn_lrelu(h, layer):
        fout = LAYER_DIMS[layer][1]
        gamma = pk_ref[layer:layer + 1, :fout]          # (1, F)
        beta = pk_ref[4 + layer:5 + layer, :fout]       # (1, F)
        inv_b = 1.0 / h.shape[0]
        # Single traversal: sum & sum-of-squares.  Fine in f32 for the
        # well-scaled activations here; the gridded production version
        # should use the shifted/two-pass form for stability.
        mean = jnp.sum(h, axis=0, keepdims=True) * inv_b
        ex2 = jnp.sum(h * h, axis=0, keepdims=True) * inv_b
        var = ex2 - mean * mean
        scale = gamma * jax.lax.rsqrt(var + EPS)        # (1, F) row math
        shift = beta - mean * scale                     # (1, F) row math
        hn = h * scale + shift                          # only 2 tile-wide ops
        return jnp.maximum(hn, NEG_SLOPE * hn)          # LeakyReLU(0.2) as vmax

    # Linear biases b1..b4 are omitted: they cancel exactly in BN's mean
    # subtraction (training mode).
    h = bn_lrelu(matmul(z_ref[...], w1_ref), 0)
    h = bn_lrelu(matmul(h, w2_ref), 1)
    h = bn_lrelu(matmul(h, w3_ref), 2)
    h = bn_lrelu(matmul(h, w4_ref), 3)
    h = matmul(h, w5_ref) + pk_ref[8:9, :out_dim]
    o_ref[...] = jnp.tanh(h)


def init_params(key, output_dim=512):
    """Torch-like init. Linear: U(-1/sqrt(fan_in), 1/sqrt(fan_in)) for W and b;
    BatchNorm: gamma=1, beta=0. Layout per layer: [W, b, (gamma, beta)]."""
    dims = [(64, 512), (512, 256), (256, 128), (128, 256), (256, output_dim)]
    params = []
    for li, (fin, fout) in enumerate(dims):
        key, kw, kb = jax.random.split(key, 3)
        bound = fin ** -0.5
        w = jax.random.uniform(kw, (fin, fout), jnp.float32, -bound, bound)
        b = jax.random.uniform(kb, (fout,), jnp.float32, -bound, bound)
        params.extend([w, b])
        if li < 4:  # every Linear except the last is followed by BN
            params.extend([jnp.ones((fout,), jnp.float32),
                           jnp.zeros((fout,), jnp.float32)])
    return params


def prepare_params(params, weights_dtype=jnp.bfloat16):
    """One-time preprocessing (do NOT call per forward):
    cast the 5 weight matrices and pack the 9 small per-layer vectors
    (gamma1-4, beta1-4, b5) into one lane-dense (9, max(512,out_dim)) f32
    buffer -> the kernel takes 7 inputs and the wrapper adds zero XLA ops.
    params layout: [w1,b1,g1,be1, ..., w4,b4,g4,be4, w5,b5]."""
    weights = tuple(params[i].astype(weights_dtype) for i in (0, 4, 8, 12, 16))
    gammas = [params[i] for i in (2, 6, 10, 14)]
    betas = [params[i] for i in (3, 7, 11, 15)]
    b5 = params[17]
    out_dim = weights[-1].shape[1]
    pw = max(512, out_dim)
    rows = [jnp.pad(v.astype(jnp.float32), (0, pw - v.shape[0]))
            for v in gammas + betas + [b5]]
    packed = jnp.stack(rows, axis=0)                    # (9, pw), single op
    return weights, packed


def generator_forward(z, prepared):
    """prepared = prepare_params(params, ...). Single pallas_call, no wrapper ops."""
    weights, packed = prepared
    B = z.shape[0]
    out_dim = weights[-1].shape[1]

    # Tight VMEM budget: weights (dtype-aware) + activation liveness + headroom.
    w_bytes = sum(int(w.size) * w.dtype.itemsize for w in weights)
    act_bytes = 4 * B * (64 + 512 + 512 + 256 + 128 + 256 + out_dim)
    vmem_limit = int(min(max(2 * w_bytes + 2 * act_bytes + (1 << 20), 4 << 20),
                         32 << 20))

    args = (z,) + tuple(weights) + (packed,)
    return pl.pallas_call(
        generator_kernel,
        out_shape=jax.ShapeDtypeStruct((B, out_dim), jnp.float32),
        in_specs=[pl.BlockSpec(memory_space=pltpu.MemorySpace.VMEM) for _ in args],
        out_specs=pl.BlockSpec(memory_space=pltpu.MemorySpace.VMEM),
        compiler_params=pltpu.CompilerParams(vmem_limit_bytes=vmem_limit),
    )(*args)


def generator_reference(z, params):
    """Pure-JAX reference mirroring the torch forward exactly (BN training
    mode, two-pass stats, biases included everywhere)."""
    idx = 0
    h = z
    for li in range(5):
        w, b = params[idx], params[idx + 1]
        idx += 2
        h = h @ w + b
        if li < 4:
            g, be = params[idx], params[idx + 1]
            idx += 2
            mean = jnp.mean(h, axis=0, keepdims=True)
            var = jnp.mean((h - mean) ** 2, axis=0, keepdims=True)
            h = (h - mean) * jax.lax.rsqrt(var + EPS) * g + be
            h = jnp.where(h > 0, h, NEG_SLOPE * h)
        else:
            h = jnp.tanh(h)
    return h


if __name__ == "__main__":
    key = jax.random.PRNGKey(0)
    kz, kp = jax.random.split(key)

    B = 8                      # BatchNorm in training mode needs B > 1
    z = jax.random.normal(kz, (B, 64), jnp.float32)
    params = init_params(kp, output_dim=512)

    ref = generator_reference(z, params)

    # f32-weight path: must match the torch-semantics reference tightly.
    prep_f32 = prepare_params(params, weights_dtype=jnp.float32)
    out = jax.block_until_ready(generator_forward(z, prep_f32))
    assert out.shape == (B, 512)
    assert jnp.allclose(out, ref, atol=1e-4, rtol=1e-4), \
        float(jnp.max(jnp.abs(out - ref)))

    # Default (bf16-weight) path: halves weight DMA / native MXU rate; f32
    # accumulation and f32 elementwise math.  Loose sanity bound only (bf16
    # rounding across 5 layers); the tight check is the f32 path above.
    prep_bf16 = prepare_params(params)                  # bf16 weights by default
    out_bf16 = jax.block_until_ready(generator_forward(z, prep_bf16))
    assert out_bf16.shape == (B, 512)
    assert bool(jnp.all(jnp.isfinite(out_bf16)))
    assert float(jnp.max(jnp.abs(out_bf16 - ref))) < 0.25

    print("KERNEL_OK")
</pallas_src>

<mosaic_0001>
module attributes {stable_mosaic.version = 11 : i64} {
  func.func @generator_kernel(%arg0: memref<8x64xf32, #tpu.memory_space<vmem>>, %arg1: memref<64x512xf32, #tpu.memory_space<vmem>>, %arg2: memref<512x256xf32, #tpu.memory_space<vmem>>, %arg3: memref<256x128xf32, #tpu.memory_space<vmem>>, %arg4: memref<128x256xf32, #tpu.memory_space<vmem>>, %arg5: memref<256x512xf32, #tpu.memory_space<vmem>>, %arg6: memref<9x512xf32, #tpu.memory_space<vmem>>, %arg7: memref<8x512xf32, #tpu.memory_space<vmem>>) attributes {dimension_semantics = [], scalar_prefetch = 0 : i64, scratch_operands = 0 : i64, tpu.core_type = #tpu.core_type<tc>} {
    %c0 = arith.constant 0 : index
    %c0_0 = arith.constant 0 : index
    %0 = vector.load %arg0[%c0, %c0_0] : memref<8x64xf32, #tpu.memory_space<vmem>>, vector<8x64xf32>
    %c0_1 = arith.constant 0 : index
    %c0_2 = arith.constant 0 : index
    %1 = vector.load %arg1[%c0_1, %c0_2] : memref<64x512xf32, #tpu.memory_space<vmem>>, vector<64x512xf32>
    %cst = arith.constant dense<0.000000e+00> : vector<8x512xf32>
    %2 = tpu.matmul %0, %1, %cst {dimension_numbers = #tpu.dot_dimension_numbers<[1], [0], [0], [1], [0, 0, 1, 1], [], []>} : vector<8x64xf32>, vector<64x512xf32>, vector<8x512xf32> -> vector<8x512xf32>
    %c0_3 = arith.constant 0 : index
    %c0_4 = arith.constant 0 : index
    %3 = vector.load %arg6[%c0_3, %c0_4] : memref<9x512xf32, #tpu.memory_space<vmem>>, vector<1x512xf32>
    %c4 = arith.constant 4 : index
    %c0_5 = arith.constant 0 : index
    %4 = vector.load %arg6[%c4, %c0_5] : memref<9x512xf32, #tpu.memory_space<vmem>>, vector<1x512xf32>
    %cst_6 = arith.constant dense<0.000000e+00> : vector<512xf32>
    %5 = vector.multi_reduction <add>, %2, %cst_6 [0] : vector<8x512xf32> to vector<512xf32>
    %6 = vector.shape_cast %5 : vector<512xf32> to vector<1x512xf32>
    %cst_7 = arith.constant 1.250000e-01 : f32
    %7 = vector.broadcast %cst_7 : f32 to vector<1x512xf32>
    %8 = arith.mulf %6, %7 : vector<1x512xf32>
    %9 = arith.mulf %2, %2 : vector<8x512xf32>
    %cst_8 = arith.constant dense<0.000000e+00> : vector<512xf32>
    %10 = vector.multi_reduction <add>, %9, %cst_8 [0] : vector<8x512xf32> to vector<512xf32>
    %11 = vector.shape_cast %10 : vector<512xf32> to vector<1x512xf32>
    %cst_9 = arith.constant 1.250000e-01 : f32
    %12 = vector.broadcast %cst_9 : f32 to vector<1x512xf32>
    %13 = arith.mulf %11, %12 : vector<1x512xf32>
    %14 = arith.mulf %8, %8 : vector<1x512xf32>
    %15 = arith.subf %13, %14 : vector<1x512xf32>
    %cst_10 = arith.constant 9.99999974E-6 : f32
    %16 = vector.broadcast %cst_10 : f32 to vector<1x512xf32>
    %17 = arith.addf %15, %16 : vector<1x512xf32>
    %18 = math.rsqrt %17 : vector<1x512xf32>
    %19 = arith.mulf %3, %18 : vector<1x512xf32>
    %20 = arith.mulf %8, %19 : vector<1x512xf32>
    %21 = arith.subf %4, %20 : vector<1x512xf32>
    %22 = vector.broadcast %19 : vector<1x512xf32> to vector<8x512xf32>
    %23 = arith.mulf %2, %22 : vector<8x512xf32>
    %24 = vector.broadcast %21 : vector<1x512xf32> to vector<8x512xf32>
    %25 = arith.addf %23, %24 : vector<8x512xf32>
    %cst_11 = arith.constant 2.000000e-01 : f32
    %26 = vector.broadcast %cst_11 : f32 to vector<8x512xf32>
    %27 = arith.mulf %26, %25 : vector<8x512xf32>
    %28 = arith.maximumf %25, %27 : vector<8x512xf32>
    %c0_12 = arith.constant 0 : index
    %c0_13 = arith.constant 0 : index
    %29 = vector.load %arg2[%c0_12, %c0_13] : memref<512x256xf32, #tpu.memory_space<vmem>>, vector<512x256xf32>
    %cst_14 = arith.constant dense<0.000000e+00> : vector<8x256xf32>
    %30 = tpu.matmul %28, %29, %cst_14 {dimension_numbers = #tpu.dot_dimension_numbers<[1], [0], [0], [1], [0, 0, 1, 1], [], []>} : vector<8x512xf32>, vector<512x256xf32>, vector<8x256xf32> -> vector<8x256xf32>
    %c1 = arith.constant 1 : index
    %c0_15 = arith.constant 0 : index
    %31 = vector.load %arg6[%c1, %c0_15] : memref<9x512xf32, #tpu.memory_space<vmem>>, vector<1x256xf32>
    %c5 = arith.constant 5 : index
    %c0_16 = arith.constant 0 : index
    %32 = vector.load %arg6[%c5, %c0_16] : memref<9x512xf32, #tpu.memory_space<vmem>>, vector<1x256xf32>
    %cst_17 = arith.constant dense<0.000000e+00> : vector<256xf32>
    %33 = vector.multi_reduction <add>, %30, %cst_17 [0] : vector<8x256xf32> to vector<256xf32>
    %34 = vector.shape_cast %33 : vector<256xf32> to vector<1x256xf32>
    %cst_18 = arith.constant 1.250000e-01 : f32
    %35 = vector.broadcast %cst_18 : f32 to vector<1x256xf32>
    %36 = arith.mulf %34, %35 : vector<1x256xf32>
    %37 = arith.mulf %30, %30 : vector<8x256xf32>
    %cst_19 = arith.constant dense<0.000000e+00> : vector<256xf32>
    %38 = vector.multi_reduction <add>, %37, %cst_19 [0] : vector<8x256xf32> to vector<256xf32>
    %39 = vector.shape_cast %38 : vector<256xf32> to vector<1x256xf32>
    %cst_20 = arith.constant 1.250000e-01 : f32
    %40 = vector.broadcast %cst_20 : f32 to vector<1x256xf32>
    %41 = arith.mulf %39, %40 : vector<1x256xf32>
    %42 = arith.mulf %36, %36 : vector<1x256xf32>
    %43 = arith.subf %41, %42 : vector<1x256xf32>
    %cst_21 = arith.constant 9.99999974E-6 : f32
    %44 = vector.broadcast %cst_21 : f32 to vector<1x256xf32>
    %45 = arith.addf %43, %44 : vector<1x256xf32>
    %46 = math.rsqrt %45 : vector<1x256xf32>
    %47 = arith.mulf %31, %46 : vector<1x256xf32>
    %48 = arith.mulf %36, %47 : vector<1x256xf32>
    %49 = arith.subf %32, %48 : vector<1x256xf32>
    %50 = vector.broadcast %47 : vector<1x256xf32> to vector<8x256xf32>
    %51 = arith.mulf %30, %50 : vector<8x256xf32>
    %52 = vector.broadcast %49 : vector<1x256xf32> to vector<8x256xf32>
    %53 = arith.addf %51, %52 : vector<8x256xf32>
    %cst_22 = arith.constant 2.000000e-01 : f32
    %54 = vector.broadcast %cst_22 : f32 to vector<8x256xf32>
    %55 = arith.mulf %54, %53 : vector<8x256xf32>
    %56 = arith.maximumf %53, %55 : vector<8x256xf32>
    %c0_23 = arith.constant 0 : index
    %c0_24 = arith.constant 0 : index
    %57 = vector.load %arg3[%c0_23, %c0_24] : memref<256x128xf32, #tpu.memory_space<vmem>>, vector<256x128xf32>
    %cst_25 = arith.constant dense<0.000000e+00> : vector<8x128xf32>
    %58 = tpu.matmul %56, %57, %cst_25 {dimension_numbers = #tpu.dot_dimension_numbers<[1], [0], [0], [1], [0, 0, 1, 1], [], []>} : vector<8x256xf32>, vector<256x128xf32>, vector<8x128xf32> -> vector<8x128xf32>
    %c2 = arith.constant 2 : index
    %c0_26 = arith.constant 0 : index
    %59 = vector.load %arg6[%c2, %c0_26] : memref<9x512xf32, #tpu.memory_space<vmem>>, vector<1x128xf32>
    %c6 = arith.constant 6 : index
    %c0_27 = arith.constant 0 : index
    %60 = vector.load %arg6[%c6, %c0_27] : memref<9x512xf32, #tpu.memory_space<vmem>>, vector<1x128xf32>
    %cst_28 = arith.constant dense<0.000000e+00> : vector<128xf32>
    %61 = vector.multi_reduction <add>, %58, %cst_28 [0] : vector<8x128xf32> to vector<128xf32>
    %62 = vector.shape_cast %61 : vector<128xf32> to vector<1x128xf32>
    %cst_29 = arith.constant 1.250000e-01 : f32
    %63 = vector.broadcast %cst_29 : f32 to vector<1x128xf32>
    %64 = arith.mulf %62, %63 : vector<1x128xf32>
    %65 = arith.mulf %58, %58 : vector<8x128xf32>
    %cst_30 = arith.constant dense<0.000000e+00> : vector<128xf32>
    %66 = vector.multi_reduction <add>, %65, %cst_30 [0] : vector<8x128xf32> to vector<128xf32>
    %67 = vector.shape_cast %66 : vector<128xf32> to vector<1x128xf32>
    %cst_31 = arith.constant 1.250000e-01 : f32
    %68 = vector.broadcast %cst_31 : f32 to vector<1x128xf32>
    %69 = arith.mulf %67, %68 : vector<1x128xf32>
    %70 = arith.mulf %64, %64 : vector<1x128xf32>
    %71 = arith.subf %69, %70 : vector<1x128xf32>
    %cst_32 = arith.constant 9.99999974E-6 : f32
    %72 = vector.broadcast %cst_32 : f32 to vector<1x128xf32>
    %73 = arith.addf %71, %72 : vector<1x128xf32>
    %74 = math.rsqrt %73 : vector<1x128xf32>
    %75 = arith.mulf %59, %74 : vector<1x128xf32>
    %76 = arith.mulf %64, %75 : vector<1x128xf32>
    %77 = arith.subf %60, %76 : vector<1x128xf32>
    %78 = vector.broadcast %75 : vector<1x128xf32> to vector<8x128xf32>
    %79 = arith.mulf %58, %78 : vector<8x128xf32>
    %80 = vector.broadcast %77 : vector<1x128xf32> to vector<8x128xf32>
    %81 = arith.addf %79, %80 : vector<8x128xf32>
    %cst_33 = arith.constant 2.000000e-01 : f32
    %82 = vector.broadcast %cst_33 : f32 to vector<8x128xf32>
    %83 = arith.mulf %82, %81 : vector<8x128xf32>
    %84 = arith.maximumf %81, %83 : vector<8x128xf32>
    %c0_34 = arith.constant 0 : index
    %c0_35 = arith.constant 0 : index
    %85 = vector.load %arg4[%c0_34, %c0_35] : memref<128x256xf32, #tpu.memory_space<vmem>>, vector<128x256xf32>
    %cst_36 = arith.constant dense<0.000000e+00> : vector<8x256xf32>
    %86 = tpu.matmul %84, %85, %cst_36 {dimension_numbers = #tpu.dot_dimension_numbers<[1], [0], [0], [1], [0, 0, 1, 1], [], []>} : vector<8x128xf32>, vector<128x256xf32>, vector<8x256xf32> -> vector<8x256xf32>
    %c3 = arith.constant 3 : index
    %c0_37 = arith.constant 0 : index
    %87 = vector.load %arg6[%c3, %c0_37] : memref<9x512xf32, #tpu.memory_space<vmem>>, vector<1x256xf32>
    %c7 = arith.constant 7 : index
    %c0_38 = arith.constant 0 : index
    %88 = vector.load %arg6[%c7, %c0_38] : memref<9x512xf32, #tpu.memory_space<vmem>>, vector<1x256xf32>
    %cst_39 = arith.constant dense<0.000000e+00> : vector<256xf32>
    %89 = vector.multi_reduction <add>, %86, %cst_39 [0] : vector<8x256xf32> to vector<256xf32>
    %90 = vector.shape_cast %89 : vector<256xf32> to vector<1x256xf32>
    %cst_40 = arith.constant 1.250000e-01 : f32
    %91 = vector.broadcast %cst_40 : f32 to vector<1x256xf32>
    %92 = arith.mulf %90, %91 : vector<1x256xf32>
    %93 = arith.mulf %86, %86 : vector<8x256xf32>
    %cst_41 = arith.constant dense<0.000000e+00> : vector<256xf32>
    %94 = vector.multi_reduction <add>, %93, %cst_41 [0] : vector<8x256xf32> to vector<256xf32>
    %95 = vector.shape_cast %94 : vector<256xf32> to vector<1x256xf32>
    %cst_42 = arith.constant 1.250000e-01 : f32
    %96 = vector.broadcast %cst_42 : f32 to vector<1x256xf32>
    %97 = arith.mulf %95, %96 : vector<1x256xf32>
    %98 = arith.mulf %92, %92 : vector<1x256xf32>
    %99 = arith.subf %97, %98 : vector<1x256xf32>
    %cst_43 = arith.constant 9.99999974E-6 : f32
    %100 = vector.broadcast %cst_43 : f32 to vector<1x256xf32>
    %101 = arith.addf %99, %100 : vector<1x256xf32>
    %102 = math.rsqrt %101 : vector<1x256xf32>
    %103 = arith.mulf %87, %102 : vector<1x256xf32>
    %104 = arith.mulf %92, %103 : vector<1x256xf32>
    %105 = arith.subf %88, %104 : vector<1x256xf32>
    %106 = vector.broadcast %103 : vector<1x256xf32> to vector<8x256xf32>
    %107 = arith.mulf %86, %106 : vector<8x256xf32>
    %108 = vector.broadcast %105 : vector<1x256xf32> to vector<8x256xf32>
    %109 = arith.addf %107, %108 : vector<8x256xf32>
    %cst_44 = arith.constant 2.000000e-01 : f32
    %110 = vector.broadcast %cst_44 : f32 to vector<8x256xf32>
    %111 = arith.mulf %110, %109 : vector<8x256xf32>
    %112 = arith.maximumf %109, %111 : vector<8x256xf32>
    %c0_45 = arith.constant 0 : index
    %c0_46 = arith.constant 0 : index
    %113 = vector.load %arg5[%c0_45, %c0_46] : memref<256x512xf32, #tpu.memory_space<vmem>>, vector<256x512xf32>
    %cst_47 = arith.constant dense<0.000000e+00> : vector<8x512xf32>
    %114 = tpu.matmul %112, %113, %cst_47 {dimension_numbers = #tpu.dot_dimension_numbers<[1], [0], [0], [1], [0, 0, 1, 1], [], []>} : vector<8x256xf32>, vector<256x512xf32>, vector<8x512xf32> -> vector<8x512xf32>
    %c8 = arith.constant 8 : index
    %c0_48 = arith.constant 0 : index
    %115 = vector.load %arg6[%c8, %c0_48] : memref<9x512xf32, #tpu.memory_space<vmem>>, vector<1x512xf32>
    %116 = vector.broadcast %115 : vector<1x512xf32> to vector<8x512xf32>
    %117 = arith.addf %114, %116 : vector<8x512xf32>
    %118 = math.tanh %117 : vector<8x512xf32>
    %c0_49 = arith.constant 0 : index
    %c0_50 = arith.constant 0 : index
    %119 = vector.load %arg7[%c0_49, %c0_50] : memref<8x512xf32, #tpu.memory_space<vmem>>, vector<8x512xf32>
    tpu.vector_store %arg7[%c0_49, %c0_50], %118 {strides = array<i32>} : memref<8x512xf32, #tpu.memory_space<vmem>>, vector<8x512xf32>,
    return
  }
}

</mosaic_0001>

<llo_original>
// kernel: tpu_custom_call.1
$region0: #{tpu_custom_call.1}
  #allocation0 [shape = 'u32[]', space=smem, size = 0x4, offset = 0x4, fixed_abs, tag = 'smem constant byte address 0x4 - core index']
  #allocation1 [shape = 'u32[144,128]{1,0:T(1,128)}', space=vmem, size = 0x12000, scoped, tag = 'internal scratch']
  %s0 = inlined_call_operand.hbm [shape: f32[8,64], index: 0, kind: input, shape index: {}]
  %s1 = inlined_call_operand.hbm [shape: f32[64,512], index: 1, kind: input, shape index: {}]
  %s2 = inlined_call_operand.hbm [shape: f32[512,256], index: 2, kind: input, shape index: {}]
  %s3 = inlined_call_operand.hbm [shape: f32[256,128], index: 3, kind: input, shape index: {}]
  %s4 = inlined_call_operand.hbm [shape: f32[128,256], index: 4, kind: input, shape index: {}]
  %s5 = inlined_call_operand.hbm [shape: f32[256,512], index: 5, kind: input, shape index: {}]
  %s6 = inlined_call_operand.hbm [shape: f32[9,512], index: 6, kind: input, shape index: {}]
  %s7 = inlined_call_operand.hbm [shape: f32[8,512], index: 7, kind: output, shape index: {}]
  %s8 = sld [smem:[#allocation0]]
  $region66: #{tpu_custom_call.1} parent=0
    _
  %s10 = ssub.s32 1, %s8
  %s11 = scalar_select 0, %s10, %s8
  $region1: #{tpu_custom_call.1} parent=0
    #allocation2 [shape = 'u8[4096]{0}', space=vmem, size = 0x1000, scoped, tag = 'input window, operand 0, single buffered']
    #allocation3 [shape = 's32[1]{0}', space=sflag, size = 0x4, scoped, tag = 'scoped memory for tpu_custom_call.1']
    #allocation4 [shape = 's32[1]{0}', space=sflag, size = 0x4, scoped, tag = 'scoped memory for tpu_custom_call.1']
    #allocation5 [shape = 'u8[131072]{0}', space=vmem, size = 0x20000, scoped, tag = 'input window, operand 1, single buffered']
    #allocation6 [shape = 's32[1]{0}', space=sflag, size = 0x4, scoped, tag = 'scoped memory for tpu_custom_call.1']
    #allocation7 [shape = 'u8[524288]{0}', space=vmem, size = 0x80000, scoped, tag = 'input window, operand 2, single buffered']
    #allocation8 [shape = 'u8[131072]{0}', space=vmem, size = 0x20000, scoped, tag = 'input window, operand 3, single buffered']
    #allocation9 [shape = 's32[1]{0}', space=sflag, size = 0x4, scoped, tag = 'scoped memory for tpu_custom_call.1']
    #allocation10 [shape = 'u8[131072]{0}', space=vmem, size = 0x20000, scoped, tag = 'input window, operand 4, single buffered']
    #allocation11 [shape = 'u8[524288]{0}', space=vmem, size = 0x80000, scoped, tag = 'input window, operand 5, single buffered']
    #allocation12 [shape = 's32[1]{0}', space=sflag, size = 0x4, scoped, tag = 'scoped memory for tpu_custom_call.1']
    #allocation13 [shape = 'u8[32768]{0}', space=vmem, size = 0x8000, scoped, tag = 'input window, operand 6, single buffered']
    #allocation14 [shape = 'u8[16384]{0}', space=vmem, size = 0x4000, scoped, tag = 'output window, operand 0, single buffered']
    %12 = vsyncpa [#allocation3], 0
    %13 = vsyncpa [#allocation6], 0
    %14 = vsyncpa [#allocation9], 0
    %15 = vsyncpa [#allocation12], 0
    %16 = vsyncpa [#allocation4], 0
    // Predicated region
    $region2: #{tpu_custom_call.1} parent=1 // pred_check
      _
    $region3: #{tpu_custom_call.1} parent=1 // pred_check_branch
      %18 = sbr.rel (0) target = $region5
    $region4: #{tpu_custom_call.1} parent=1 // pred_region
      %s20 = ssub.s32 128, 128
      %21 = vsyncadd [#allocation3], %s20
      %s23 = sshll.u32 [#allocation2], 4
      %s24 = int_to_ptr.vmem [resolvable:$true] %s23
      %26 = dma.hbm_to_vmem [thread:$0]  %s0, 128, %s24, [#allocation3]
    $region5: #{tpu_custom_call.1} parent=1 // pred_fallthru
      _
    // Predicated region
    $region6: #{tpu_custom_call.1} parent=1 // pred_check
      _
    $region7: #{tpu_custom_call.1} parent=1 // pred_check_branch
      %28 = sbr.rel (0) target = $region9
    $region8: #{tpu_custom_call.1} parent=1 // pred_region
      %s30 = ssub.s32 4096, 4096
      %31 = vsyncadd [#allocation6], %s30
      %s32 = sshll.u32 [#allocation5], 4
      %s33 = int_to_ptr.vmem [resolvable:$true] %s32
      %38 = dma.hbm_to_vmem [thread:$0]  %s1, 4096, %s33, [#allocation6], 512, 512, 32
    $region9: #{tpu_custom_call.1} parent=1 // pred_fallthru
      _
    // Predicated region
    $region10: #{tpu_custom_call.1} parent=1 // pred_check
      _
    $region11: #{tpu_custom_call.1} parent=1 // pred_check_branch
      %40 = sbr.rel (0) target = $region13
    $region12: #{tpu_custom_call.1} parent=1 // pred_region
      %s42 = ssub.s32 16384, 16384
      %43 = vsyncadd [#allocation6], %s42
      %s44 = sshll.u32 [#allocation7], 4
      %s45 = int_to_ptr.vmem [resolvable:$true] %s44
      %50 = dma.hbm_to_vmem [thread:$0]  %s2, 16384, %s45, [#allocation6], 256, 256, 16
    $region13: #{tpu_custom_call.1} parent=1 // pred_fallthru
      _
    // Predicated region
    $region14: #{tpu_custom_call.1} parent=1 // pred_check
      _
    $region15: #{tpu_custom_call.1} parent=1 // pred_check_branch
      %52 = sbr.rel (0) target = $region17
    $region16: #{tpu_custom_call.1} parent=1 // pred_region
      %s54 = ssub.s32 4096, 4096
      %55 = vsyncadd [#allocation9], %s54
      %s56 = sshll.u32 [#allocation8], 4
      %s57 = int_to_ptr.vmem [resolvable:$true] %s56
      %62 = dma.hbm_to_vmem [thread:$0]  %s3, 4096, %s57, [#allocation9], 128, 128, 8
    $region17: #{tpu_custom_call.1} parent=1 // pred_fallthru
      _
    // Predicated region
    $region18: #{tpu_custom_call.1} parent=1 // pred_check
      _
    $region19: #{tpu_custom_call.1} parent=1 // pred_check_branch
      %64 = sbr.rel (0) target = $region21
    $region20: #{tpu_custom_call.1} parent=1 // pred_region
      %s66 = ssub.s32 4096, 4096
      %67 = vsyncadd [#allocation9], %s66
      %s68 = sshll.u32 [#allocation10], 4
      %s69 = int_to_ptr.vmem [resolvable:$true] %s68
      %74 = dma.hbm_to_vmem [thread:$0]  %s4, 4096, %s69, [#allocation9], 256, 256, 16
    $region21: #{tpu_custom_call.1} parent=1 // pred_fallthru
      _
    // Predicated region
    $region22: #{tpu_custom_call.1} parent=1 // pred_check
      _
    $region23: #{tpu_custom_call.1} parent=1 // pred_check_branch
      %76 = sbr.rel (0) target = $region25
    $region24: #{tpu_custom_call.1} parent=1 // pred_region
      %s78 = ssub.s32 16384, 16384
      %79 = vsyncadd [#allocation12], %s78
      %s80 = sshll.u32 [#allocation11], 4
      %s81 = int_to_ptr.vmem [resolvable:$true] %s80
      %86 = dma.hbm_to_vmem [thread:$0]  %s5, 16384, %s81, [#allocation12], 512, 512, 32
    $region25: #{tpu_custom_call.1} parent=1 // pred_fallthru
      _
    // Predicated region
    $region26: #{tpu_custom_call.1} parent=1 // pred_check
      _
    $region27: #{tpu_custom_call.1} parent=1 // pred_check_branch
      %88 = sbr.rel (0) target = $region29
    $region28: #{tpu_custom_call.1} parent=1 // pred_region
      %s90 = ssub.s32 1024, 1024
      %91 = vsyncadd [#allocation12], %s90
      %s92 = sshll.u32 [#allocation13], 4
      %s93 = int_to_ptr.vmem [resolvable:$true] %s92
      %98 = dma.hbm_to_vmem [thread:$0]  %s6, 1024, %s93, [#allocation12], 512, 512, 32
    $region29: #{tpu_custom_call.1} parent=1 // pred_fallthru
      _
    // Predicated region
    $region30: #{tpu_custom_call.1} parent=1 // pred_check
      _
    $region31: #{tpu_custom_call.1} parent=1 // pred_check_branch
      %100 = sbr.rel (0) target = $region33
    $region32: #{tpu_custom_call.1} parent=1 // pred_region
      %101 = dma.done [#allocation3], 128
    $region33: #{tpu_custom_call.1} parent=1 // pred_fallthru
      _
    // Predicated region
    $region34: #{tpu_custom_call.1} parent=1 // pred_check
      _
    $region35: #{tpu_custom_call.1} parent=1 // pred_check_branch
      %103 = sbr.rel (0) target = $region37
    $region36: #{tpu_custom_call.1} parent=1 // pred_region
      %104 = dma.done [#allocation6], 4096
    $region37: #{tpu_custom_call.1} parent=1 // pred_fallthru
      _
    // Predicated region
    $region38: #{tpu_custom_call.1} parent=1 // pred_check
      _
    $region39: #{tpu_custom_call.1} parent=1 // pred_check_branch
      %106 = sbr.rel (0) target = $region41
    $region40: #{tpu_custom_call.1} parent=1 // pred_region
      %107 = dma.done [#allocation6], 16384
    $region41: #{tpu_custom_call.1} parent=1 // pred_fallthru
      _
    // Predicated region
    $region42: #{tpu_custom_call.1} parent=1 // pred_check
      _
    $region43: #{tpu_custom_call.1} parent=1 // pred_check_branch
      %109 = sbr.rel (0) target = $region45
    $region44: #{tpu_custom_call.1} parent=1 // pred_region
      %110 = dma.done [#allocation9], 4096
    $region45: #{tpu_custom_call.1} parent=1 // pred_fallthru
      _
    // Predicated region
    $region46: #{tpu_custom_call.1} parent=1 // pred_check
      _
    $region47: #{tpu_custom_call.1} parent=1 // pred_check_branch
      %112 = sbr.rel (0) target = $region49
    $region48: #{tpu_custom_call.1} parent=1 // pred_region
      %113 = dma.done [#allocation9], 4096
    $region49: #{tpu_custom_call.1} parent=1 // pred_fallthru
      _
    // Predicated region
    $region50: #{tpu_custom_call.1} parent=1 // pred_check
      _
    $region51: #{tpu_custom_call.1} parent=1 // pred_check_branch
      %115 = sbr.rel (0) target = $region53
    $region52: #{tpu_custom_call.1} parent=1 // pred_region
      %116 = dma.done [#allocation12], 16384
    $region53: #{tpu_custom_call.1} parent=1 // pred_fallthru
      _
    // Predicated region
    $region54: #{tpu_custom_call.1} parent=1 // pred_check
      _
    $region55: #{tpu_custom_call.1} parent=1 // pred_check_branch
      %118 = sbr.rel (0) target = $region57
    $region56: #{tpu_custom_call.1} parent=1 // pred_region
      %119 = dma.done [#allocation12], 1024
    $region57: #{tpu_custom_call.1} parent=1 // pred_fallthru
      _
    %v120 = vld [vmem:[#allocation2] sm:$0xff]
    %v121 = vld [vmem:[#allocation5] sm:$0xff]
    %v122 = vld [vmem:[#allocation5 + $0x8] sm:$0xff]
    %v123 = vld [vmem:[#allocation5 + $0x10] sm:$0xff]
    %v124 = vld [vmem:[#allocation5 + $0x18] sm:$0xff]
    %v125 = vld [vmem:[#allocation5 + $0x20] sm:$0xff]
    %v126 = vld [vmem:[#allocation5 + $0x28] sm:$0xff]
    %v127 = vld [vmem:[#allocation5 + $0x30] sm:$0xff]
    %v128 = vld [vmem:[#allocation5 + $0x38] sm:$0xff]
    %v129 = vld [vmem:[#allocation5 + $0x40] sm:$0xff]
    %v130 = vld [vmem:[#allocation5 + $0x48] sm:$0xff]
    %v131 = vld [vmem:[#allocation5 + $0x50] sm:$0xff]
    %v132 = vld [vmem:[#allocation5 + $0x58] sm:$0xff]
    %v133 = vld [vmem:[#allocation5 + $0x60] sm:$0xff]
    %v134 = vld [vmem:[#allocation5 + $0x68] sm:$0xff]
    %v135 = vld [vmem:[#allocation5 + $0x70] sm:$0xff]
    %v136 = vld [vmem:[#allocation5 + $0x78] sm:$0xff]
    %v137 = vld [vmem:[#allocation5 + $0x80] sm:$0xff]
    %v138 = vld [vmem:[#allocation5 + $0x88] sm:$0xff]
    %v139 = vld [vmem:[#allocation5 + $0x90] sm:$0xff]
    %v140 = vld [vmem:[#allocation5 + $0x98] sm:$0xff]
    %v141 = vld [vmem:[#allocation5 + $0xa0] sm:$0xff]
    %v142 = vld [vmem:[#allocation5 + $0xa8] sm:$0xff]
    %v143 = vld [vmem:[#allocation5 + $0xb0] sm:$0xff]
    %v144 = vld [vmem:[#allocation5 + $0xb8] sm:$0xff]
    %v145 = vld [vmem:[#allocation5 + $0xc0] sm:$0xff]
    %v146 = vld [vmem:[#allocation5 + $0xc8] sm:$0xff]
    %v147 = vld [vmem:[#allocation5 + $0xd0] sm:$0xff]
    %v148 = vld [vmem:[#allocation5 + $0xd8] sm:$0xff]
    %v149 = vld [vmem:[#allocation5 + $0xe0] sm:$0xff]
    %v150 = vld [vmem:[#allocation5 + $0xe8] sm:$0xff]
    %v151 = vld [vmem:[#allocation5 + $0xf0] sm:$0xff]
    %v152 = vld [vmem:[#allocation5 + $0xf8] sm:$0xff]
    %vm153 = vcmask 523264
    %v155 = vsel %vm153, %v120, 0
    %157 = vmatprep.subr.mxu0 %v122
    %158 = vmatpush1.msra.mxu0 %v121
    %159 = vmatprep.subr.mxu0 %v126
    %160 = vmatpush1.msra.mxu0 %v125
    %161 = vmatprep.subr.mxu0 %v130
    %162 = vmatpush1.msra.mxu0 %v129
    %163 = vmatprep.subr.mxu0 %v134
    %164 = vmatpush1.msra.mxu0 %v133
    %165 = vmatprep.subr.mxu0 %v138
    %166 = vmatpush1.msra.mxu0 %v137
    %167 = vmatprep.subr.mxu0 %v142
    %168 = vmatpush1.msra.mxu0 %v141
    %169 = vmatprep.subr.mxu0 %v146
    %170 = vmatpush1.msra.mxu0 %v145
    %171 = vmatprep.subr.mxu0 %v150
    %172 = vmatpush1.msra.mxu0 %v149
    %173 = vmatprep.subr.mxu0 0.0
    %174 = vmatpush1.msra.mxu0 0.0
    %175 = vmatprep.subr.mxu0 0.0
    %176 = vmatpush1.msra.mxu0 0.0
    %177 = vmatprep.subr.mxu0 0.0
    %178 = vmatpush1.msra.mxu0 0.0
    %179 = vmatprep.subr.mxu0 0.0
    %180 = vmatpush1.msra.mxu0 0.0
    %181 = vmatprep.subr.mxu0 0.0
    %182 = vmatpush1.msra.mxu0 0.0
    %183 = vmatprep.subr.mxu0 0.0
    %184 = vmatpush1.msra.mxu0 0.0
    %185 = vmatprep.subr.mxu0 0.0
    %186 = vmatpush1.msra.mxu0 0.0
    %187 = vmatprep.subr.mxu0 0.0
    %188 = vmatpush1.msra.mxu0 0.0
    %189 = vmatprep.subr.mxu0 0.0
    %190 = vmatpush1.msra.mxu0 0.0
    %191 = vmatprep.subr.mxu0 0.0
    %192 = vmatpush1.msra.mxu0 0.0
    %193 = vmatprep.subr.mxu0 0.0
    %194 = vmatpush1.msra.mxu0 0.0
    %195 = vmatprep.subr.mxu0 0.0
    %196 = vmatpush1.msra.mxu0 0.0
    %197 = vmatprep.subr.mxu0 0.0
    %198 = vmatpush1.msra.mxu0 0.0
    %199 = vmatprep.subr.mxu0 0.0
    %200 = vmatpush1.msra.mxu0 0.0
    %201 = vmatprep.subr.mxu0 0.0
    %202 = vmatpush1.msra.mxu0 0.0
    %203 = vmatprep.subr.mxu0 0.0
    %204 = vmatpush1.msra.mxu0 0.0
    %205 = vmatprep.subr.mxu0 0.0
    %206 = vmatpush1.msra.mxu0 0.0
    %207 = vmatprep.subr.mxu0 0.0
    %208 = vmatpush1.msra.mxu0 0.0
    %209 = vmatprep.subr.mxu0 0.0
    %210 = vmatpush1.msra.mxu0 0.0
    %211 = vmatprep.subr.mxu0 0.0
    %212 = vmatpush1.msra.mxu0 0.0
    %213 = vmatprep.subr.mxu0 0.0
    %214 = vmatpush1.msra.mxu0 0.0
    %215 = vmatprep.subr.mxu0 0.0
    %216 = vmatpush1.msra.mxu0 0.0
    %217 = vmatprep.subr.mxu0 0.0
    %218 = vmatpush1.msra.mxu0 0.0
    %219 = vmatprep.subr.mxu0 0.0
    %220 = vmatpush1.msra.mxu0 0.0
    %221 = vmatprep.mubr.f32.mxu0 0.0
    %222 = vmatmul.mubr.f32.gmra.mrb[0].mxu0 %v155
    %v223 = vpop.f32.mrb[0].mxu0
    %v224 = vadd.f32 0.0, %v223
    %v225 = vpop.f32.mrb[0].mxu0
    %v226 = vadd.f32 0.0, %v225
    %227 = vdwg.mxu0
    %228 = vmatprep.subr.mxu0 %v124
    %229 = vmatpush1.msra.mxu0 %v123
    %230 = vmatprep.subr.mxu0 %v128
    %231 = vmatpush1.msra.mxu0 %v127
    %232 = vmatprep.subr.mxu0 %v132
    %233 = vmatpush1.msra.mxu0 %v131
    %234 = vmatprep.subr.mxu0 %v136
    %235 = vmatpush1.msra.mxu0 %v135
    %236 = vmatprep.subr.mxu0 %v140
    %237 = vmatpush1.msra.mxu0 %v139
    %238 = vmatprep.subr.mxu0 %v144
    %239 = vmatpush1.msra.mxu0 %v143
    %240 = vmatprep.subr.mxu0 %v148
    %241 = vmatpush1.msra.mxu0 %v147
    %242 = vmatprep.subr.mxu0 %v152
    %243 = vmatpush1.msra.mxu0 %v151
    %244 = vmatprep.subr.mxu0 0.0
    %245 = vmatpush1.msra.mxu0 0.0
    %246 = vmatprep.subr.mxu0 0.0
    %247 = vmatpush1.msra.mxu0 0.0
    %248 = vmatprep.subr.mxu0 0.0
    %249 = vmatpush1.msra.mxu0 0.0
    %250 = vmatprep.subr.mxu0 0.0
    %251 = vmatpush1.msra.mxu0 0.0
    %252 = vmatprep.subr.mxu0 0.0
    %253 = vmatpush1.msra.mxu0 0.0
    %254 = vmatprep.subr.mxu0 0.0
    %255 = vmatpush1.msra.mxu0 0.0
    %256 = vmatprep.subr.mxu0 0.0
    %257 = vmatpush1.msra.mxu0 0.0
    %258 = vmatprep.subr.mxu0 0.0
    %259 = vmatpush1.msra.mxu0 0.0
    %260 = vmatprep.subr.mxu0 0.0
    %261 = vmatpush1.msra.mxu0 0.0
    %262 = vmatprep.subr.mxu0 0.0
    %263 = vmatpush1.msra.mxu0 0.0
    %264 = vmatprep.subr.mxu0 0.0
    %265 = vmatpush1.msra.mxu0 0.0
    %266 = vmatprep.subr.mxu0 0.0
    %267 = vmatpush1.msra.mxu0 0.0
    %268 = vmatprep.subr.mxu0 0.0
    %269 = vmatpush1.msra.mxu0 0.0
    %270 = vmatprep.subr.mxu0 0.0
    %271 = vmatpush1.msra.mxu0 0.0
    %272 = vmatprep.subr.mxu0 0.0
    %273 = vmatpush1.msra.mxu0 0.0
    %274 = vmatprep.subr.mxu0 0.0
    %275 = vmatpush1.msra.mxu0 0.0
    %276 = vmatprep.subr.mxu0 0.0
    %277 = vmatpush1.msra.mxu0 0.0
    %278 = vmatprep.subr.mxu0 0.0
    %279 = vmatpush1.msra.mxu0 0.0
    %280 = vmatprep.subr.mxu0 0.0
    %281 = vmatpush1.msra.mxu0 0.0
    %282 = vmatprep.subr.mxu0 0.0
    %283 = vmatpush1.msra.mxu0 0.0
    %284 = vmatprep.subr.mxu0 0.0
    %285 = vmatpush1.msra.mxu0 0.0
    %286 = vmatprep.subr.mxu0 0.0
    %287 = vmatpush1.msra.mxu0 0.0
    %288 = vmatprep.subr.mxu0 0.0
    %289 = vmatpush1.msra.mxu0 0.0
    %290 = vmatprep.subr.mxu0 0.0
    %291 = vmatpush1.msra.mxu0 0.0
    %292 = vmatprep.mubr.f32.mxu0 0.0
    %293 = vmatmul.mubr.f32.gmra.mrb[0].mxu0 %v155
    %v294 = vpop.f32.mrb[0].mxu0
    %v295 = vadd.f32 0.0, %v294
    %v296 = vpop.f32.mrb[0].mxu0
    %v297 = vadd.f32 0.0, %v296
    %298 = vdwg.mxu0
    %v299 = vld [vmem:[#allocation13] ss:$8 sm:$0xf]
    %s300 = scalar_lea.vmem [#allocation13], 4
    %v301 = vld [vmem:[%s300] ss:$8 sm:$0xf]
    %v302 = vrot.slane %v224, 4
    %v303 = vadd.f32 %v224, %v302
    %v304 = vrot.slane %v303, 2
    %v305 = vadd.f32 %v303, %v304
    %v306 = vrot.slane %v305, 1
    %v307 = vadd.f32 %v305, %v306
    %v308 = vrot.slane %v226, 4
    %v309 = vadd.f32 %v226, %v308
    %v310 = vrot.slane %v309, 2
    %v311 = vadd.f32 %v309, %v310
    %v312 = vrot.slane %v311, 1
    %v313 = vadd.f32 %v311, %v312
    %v314 = vrot.slane %v295, 4
    %v315 = vadd.f32 %v295, %v314
    %v316 = vrot.slane %v315, 2
    %v317 = vadd.f32 %v315, %v316
    %v318 = vrot.slane %v317, 1
    %v319 = vadd.f32 %v317, %v318
    %v320 = vrot.slane %v297, 4
    %v321 = vadd.f32 %v297, %v320
    %v322 = vrot.slane %v321, 2
    %v323 = vadd.f32 %v321, %v322
    %v324 = vrot.slane %v323, 1
    %v325 = vadd.f32 %v323, %v324
    %v326 = vmul.f32 %v307, 0.125
    %v327 = vmul.f32 %v313, 0.125
    %v328 = vmul.f32 %v319, 0.125
    %v329 = vmul.f32 %v325, 0.125
    %v330 = vmul.f32 %v224, %v224
    %v331 = vmul.f32 %v226, %v226
    %v332 = vmul.f32 %v295, %v295
    %v333 = vmul.f32 %v297, %v297
    %v334 = vrot.slane %v330, 4
    %v335 = vadd.f32 %v330, %v334
    %v336 = vrot.slane %v335, 2
    %v337 = vadd.f32 %v335, %v336
    %v338 = vrot.slane %v337, 1
    %v339 = vadd.f32 %v337, %v338
    %v340 = vrot.slane %v331, 4
    %v341 = vadd.f32 %v331, %v340
    %v342 = vrot.slane %v341, 2
    %v343 = vadd.f32 %v341, %v342
    %v344 = vrot.slane %v343, 1
    %v345 = vadd.f32 %v343, %v344
    %v346 = vrot.slane %v332, 4
    %v347 = vadd.f32 %v332, %v346
    %v348 = vrot.slane %v347, 2
    %v349 = vadd.f32 %v347, %v348
    %v350 = vrot.slane %v349, 1
    %v351 = vadd.f32 %v349, %v350
    %v352 = vrot.slane %v333, 4
    %v353 = vadd.f32 %v333, %v352
    %v354 = vrot.slane %v353, 2
    %v355 = vadd.f32 %v353, %v354
    %v356 = vrot.slane %v355, 1
    %v357 = vadd.f32 %v355, %v356
    %v358 = vmul.f32 %v339, 0.125
    %v359 = vmul.f32 %v345, 0.125
    %v360 = vmul.f32 %v351, 0.125
    %v361 = vmul.f32 %v357, 0.125
    %v362 = vmul.f32 %v326, %v326
    %v363 = vmul.f32 %v327, %v327
    %v364 = vmul.f32 %v328, %v328
    %v365 = vmul.f32 %v329, %v329
    %v366 = vsub.f32 %v358, %v362
    %v367 = vsub.f32 %v359, %v363
    %v368 = vsub.f32 %v360, %v364
    %v369 = vsub.f32 %v361, %v365
    %v370 = vadd.f32 %v366, 1e-05
    %v371 = vadd.f32 %v367, 1e-05
    %v372 = vadd.f32 %v368, 1e-05
    %v373 = vadd.f32 %v369, 1e-05
    %v374 = vrsqrt.pop %v370
    %v375 = vrsqrt.pop %v371
    %v376 = vrsqrt.pop %v372
    %v377 = vrsqrt.pop %v373
    %v382 = vcombine.low %v374, %v375
    %v383 = vcombine.low %v376, %v377
    %v385 = vunpack.c.l.s4 1966171168
    %v386 = vunpack.c.0.s8 %v385
    %v387 = vlaneseq
    %v388 = vshrl.u32 %v387, 7
    %v389 = vsub.s32 %v386, %v388
    %v390 = vrot.slane %v382, %v389
    %v392 = vunpack.c.l.s4 1966171168
    %v393 = vunpack.c.0.s8 %v392
    %v394 = vlaneseq
    %v395 = vshrl.u32 %v394, 7
    %v396 = vsub.s32 %v393, %v395
    %v397 = vrot.slane %v383, %v396
    %v398 = vcombine.low %v390, %v397
    %v400 = vunpack.c.l.s4 1966171168
    %v401 = vunpack.c.0.s8 %v400
    %v402 = vlaneseq
    %v403 = vshrl.u32 %v402, 7
    %v404 = vsub.s32 %v401, %v403
    %v405 = vrot.slane %v398, %v404
    %v407 = vmul.f32 %v299, %v405
    %v409 = vlaneseq
    %v410 = vshrl.u32 %v409, 7
    %v411 = vsub.s32 0, %v410
    %v412 = vrot.slane %v407, %v411
    %v413 = vlaneseq
    %v414 = vshrl.u32 %v413, 7
    %v415 = vsub.s32 1, %v414
    %v416 = vrot.slane %v407, %v415
    %v417 = vlaneseq
    %v418 = vshrl.u32 %v417, 7
    %v419 = vsub.s32 2, %v418
    %v420 = vrot.slane %v407, %v419
    %v421 = vlaneseq
    %v422 = vshrl.u32 %v421, 7
    %v423 = vsub.s32 3, %v422
    %v424 = vrot.slane %v407, %v423
    %v429 = vmul.f32 %v326, %v412
    %v430 = vmul.f32 %v327, %v416
    %v431 = vmul.f32 %v328, %v420
    %v432 = vmul.f32 %v329, %v424
    %v437 = vcombine.low %v429, %v430
    %v438 = vcombine.low %v431, %v432
    %v440 = vunpack.c.l.s4 1966171168
    %v441 = vunpack.c.0.s8 %v440
    %v442 = vlaneseq
    %v443 = vshrl.u32 %v442, 7
    %v444 = vsub.s32 %v441, %v443
    %v445 = vrot.slane %v437, %v444
    %v447 = vunpack.c.l.s4 1966171168
    %v448 = vunpack.c.0.s8 %v447
    %v449 = vlaneseq
    %v450 = vshrl.u32 %v449, 7
    %v451 = vsub.s32 %v448, %v450
    %v452 = vrot.slane %v438, %v451
    %v453 = vcombine.low %v445, %v452
    %v455 = vunpack.c.l.s4 1966171168
    %v456 = vunpack.c.0.s8 %v455
    %v457 = vlaneseq
    %v458 = vshrl.u32 %v457, 7
    %v459 = vsub.s32 %v456, %v458
    %v460 = vrot.slane %v453, %v459
    %v462 = vsub.f32 %v301, %v460
    %v463 = vmul.f32 %v224, %v412
    %v464 = vmul.f32 %v226, %v416
    %v465 = vmul.f32 %v295, %v420
    %v466 = vmul.f32 %v297, %v424
    %v468 = vlaneseq
    %v469 = vshrl.u32 %v468, 7
    %v470 = vsub.s32 0, %v469
    %v471 = vrot.slane %v462, %v470
    %v472 = vlaneseq
    %v473 = vshrl.u32 %v472, 7
    %v474 = vsub.s32 1, %v473
    %v475 = vrot.slane %v462, %v474
    %v476 = vlaneseq
    %v477 = vshrl.u32 %v476, 7
    %v478 = vsub.s32 2, %v477
    %v479 = vrot.slane %v462, %v478
    %v480 = vlaneseq
    %v481 = vshrl.u32 %v480, 7
    %v482 = vsub.s32 3, %v481
    %v483 = vrot.slane %v462, %v482
    %v488 = vadd.f32 %v463, %v471
    %v489 = vadd.f32 %v464, %v475
    %v490 = vadd.f32 %v465, %v479
    %v491 = vadd.f32 %v466, %v483
    %v492 = vmul.f32 %v488, 0.2
    %v493 = vmul.f32 %v489, 0.2
    %v494 = vmul.f32 %v490, 0.2
    %v495 = vmul.f32 %v491, 0.2
    %v496 = vmax.f32 %v488, %v492
    %v497 = vmax.f32 %v489, %v493
    %v498 = vmax.f32 %v490, %v494
    %v499 = vmax.f32 %v491, %v495
    %v500 = vld [vmem:[#allocation7] sm:$0xff]
    %v501 = vld [vmem:[#allocation7 + $0x8] sm:$0xff]
    %v502 = vld [vmem:[#allocation7 + $0x10] sm:$0xff]
    %v503 = vld [vmem:[#allocation7 + $0x18] sm:$0xff]
    %v504 = vld [vmem:[#allocation7 + $0x20] sm:$0xff]
    %v505 = vld [vmem:[#allocation7 + $0x28] sm:$0xff]
    %v506 = vld [vmem:[#allocation7 + $0x30] sm:$0xff]
    %v507 = vld [vmem:[#allocation7 + $0x38] sm:$0xff]
    %v508 = vld [vmem:[#allocation7 + $0x40] sm:$0xff]
    %v509 = vld [vmem:[#allocation7 + $0x48] sm:$0xff]
    %v510 = vld [vmem:[#allocation7 + $0x50] sm:$0xff]
    %v511 = vld [vmem:[#allocation7 + $0x58] sm:$0xff]
    %v512 = vld [vmem:[#allocation7 + $0x60] sm:$0xff]
    %v513 = vld [vmem:[#allocation7 + $0x68] sm:$0xff]
    %v514 = vld [vmem:[#allocation7 + $0x70] sm:$0xff]
    %v515 = vld [vmem:[#allocation7 + $0x78] sm:$0xff]
    %v516 = vld [vmem:[#allocation7 + $0x80] sm:$0xff]
    %v517 = vld [vmem:[#allocation7 + $0x88] sm:$0xff]
    %v518 = vld [vmem:[#allocation7 + $0x90] sm:$0xff]
    %v519 = vld [vmem:[#allocation7 + $0x98] sm:$0xff]
    %v520 = vld [vmem:[#allocation7 + $0xa0] sm:$0xff]
    %v521 = vld [vmem:[#allocation7 + $0xa8] sm:$0xff]
    %v522 = vld [vmem:[#allocation7 + $0xb0] sm:$0xff]
    %v523 = vld [vmem:[#allocation7 + $0xb8] sm:$0xff]
    %v524 = vld [vmem:[#allocation7 + $0xc0] sm:$0xff]
    %v525 = vld [vmem:[#allocation7 + $0xc8] sm:$0xff]
    %v526 = vld [vmem:[#allocation7 + $0xd0] sm:$0xff]
    %v527 = vld [vmem:[#allocation7 + $0xd8] sm:$0xff]
    %v528 = vld [vmem:[#allocation7 + $0xe0] sm:$0xff]
    %v529 = vld [vmem:[#allocation7 + $0xe8] sm:$0xff]
    %v530 = vld [vmem:[#allocation7 + $0xf0] sm:$0xff]
    %v531 = vld [vmem:[#allocation7 + $0xf8] sm:$0xff]
    %v532 = vld [vmem:[#allocation7 + $0x100] sm:$0xff]
    %v533 = vld [vmem:[#allocation7 + $0x108] sm:$0xff]
    %v534 = vld [vmem:[#allocation7 + $0x110] sm:$0xff]
    %v535 = vld [vmem:[#allocation7 + $0x118] sm:$0xff]
    %v536 = vld [vmem:[#allocation7 + $0x120] sm:$0xff]
    %v537 = vld [vmem:[#allocation7 + $0x128] sm:$0xff]
    %v538 = vld [vmem:[#allocation7 + $0x130] sm:$0xff]
    %v539 = vld [vmem:[#allocation7 + $0x138] sm:$0xff]
    %v540 = vld [vmem:[#allocation7 + $0x140] sm:$0xff]
    %v541 = vld [vmem:[#allocation7 + $0x148] sm:$0xff]
    %v542 = vld [vmem:[#allocation7 + $0x150] sm:$0xff]
    %v543 = vld [vmem:[#allocation7 + $0x158] sm:$0xff]
    %v544 = vld [vmem:[#allocation7 + $0x160] sm:$0xff]
    %v545 = vld [vmem:[#allocation7 + $0x168] sm:$0xff]
    %v546 = vld [vmem:[#allocation7 + $0x170] sm:$0xff]
    %v547 = vld [vmem:[#allocation7 + $0x178] sm:$0xff]
    %v548 = vld [vmem:[#allocation7 + $0x180] sm:$0xff]
    %v549 = vld [vmem:[#allocation7 + $0x188] sm:$0xff]
    %v550 = vld [vmem:[#allocation7 + $0x190] sm:$0xff]
    %v551 = vld [vmem:[#allocation7 + $0x198] sm:$0xff]
    %v552 = vld [vmem:[#allocation7 + $0x1a0] sm:$0xff]
    %v553 = vld [vmem:[#allocation7 + $0x1a8] sm:$0xff]
    %v554 = vld [vmem:[#allocation7 + $0x1b0] sm:$0xff]
    %v555 = vld [vmem:[#allocation7 + $0x1b8] sm:$0xff]
    %v556 = vld [vmem:[#allocation7 + $0x1c0] sm:$0xff]
    %v557 = vld [vmem:[#allocation7 + $0x1c8] sm:$0xff]
    %v558 = vld [vmem:[#allocation7 + $0x1d0] sm:$0xff]
    %v559 = vld [vmem:[#allocation7 + $0x1d8] sm:$0xff]
    %v560 = vld [vmem:[#allocation7 + $0x1e0] sm:$0xff]
    %v561 = vld [vmem:[#allocation7 + $0x1e8] sm:$0xff]
    %v562 = vld [vmem:[#allocation7 + $0x1f0] sm:$0xff]
    %v563 = vld [vmem:[#allocation7 + $0x1f8] sm:$0xff]
    %v564 = vld [vmem:[#allocation7 + $0x200] sm:$0xff]
    %v565 = vld [vmem:[#allocation7 + $0x208] sm:$0xff]
    %v566 = vld [vmem:[#allocation7 + $0x210] sm:$0xff]
    %v567 = vld [vmem:[#allocation7 + $0x218] sm:$0xff]
    %v568 = vld [vmem:[#allocation7 + $0x220] sm:$0xff]
    %v569 = vld [vmem:[#allocation7 + $0x228] sm:$0xff]
    %v570 = vld [vmem:[#allocation7 + $0x230] sm:$0xff]
    %v571 = vld [vmem:[#allocation7 + $0x238] sm:$0xff]
    %v572 = vld [vmem:[#allocation7 + $0x240] sm:$0xff]
    %v573 = vld [vmem:[#allocation7 + $0x248] sm:$0xff]
    %v574 = vld [vmem:[#allocation7 + $0x250] sm:$0xff]
    %v575 = vld [vmem:[#allocation7 + $0x258] sm:$0xff]
    %v576 = vld [vmem:[#allocation7 + $0x260] sm:$0xff]
    %v577 = vld [vmem:[#allocation7 + $0x268] sm:$0xff]
    %v578 = vld [vmem:[#allocation7 + $0x270] sm:$0xff]
    %v579 = vld [vmem:[#allocation7 + $0x278] sm:$0xff]
    %v580 = vld [vmem:[#allocation7 + $0x280] sm:$0xff]
    %v581 = vld [vmem:[#allocation7 + $0x288] sm:$0xff]
    %v582 = vld [vmem:[#allocation7 + $0x290] sm:$0xff]
    %v583 = vld [vmem:[#allocation7 + $0x298] sm:$0xff]
    %v584 = vld [vmem:[#allocation7 + $0x2a0] sm:$0xff]
    %v585 = vld [vmem:[#allocation7 + $0x2a8] sm:$0xff]
    %v586 = vld [vmem:[#allocation7 + $0x2b0] sm:$0xff]
    %v587 = vld [vmem:[#allocation7 + $0x2b8] sm:$0xff]
    %v588 = vld [vmem:[#allocation7 + $0x2c0] sm:$0xff]
    %v589 = vld [vmem:[#allocation7 + $0x2c8] sm:$0xff]
    %v590 = vld [vmem:[#allocation7 + $0x2d0] sm:$0xff]
    %v591 = vld [vmem:[#allocation7 + $0x2d8] sm:$0xff]
    %v592 = vld [vmem:[#allocation7 + $0x2e0] sm:$0xff]
    %v593 = vld [vmem:[#allocation7 + $0x2e8] sm:$0xff]
    %v594 = vld [vmem:[#allocation7 + $0x2f0] sm:$0xff]
    %v595 = vld [vmem:[#allocation7 + $0x2f8] sm:$0xff]
    %v596 = vld [vmem:[#allocation7 + $0x300] sm:$0xff]
    %v597 = vld [vmem:[#allocation7 + $0x308] sm:$0xff]
    %v598 = vld [vmem:[#allocation7 + $0x310] sm:$0xff]
    %v599 = vld [vmem:[#allocation7 + $0x318] sm:$0xff]
    %v600 = vld [vmem:[#allocation7 + $0x320] sm:$0xff]
    %v601 = vld [vmem:[#allocation7 + $0x328] sm:$0xff]
    %v602 = vld [vmem:[#allocation7 + $0x330] sm:$0xff]
    %v603 = vld [vmem:[#allocation7 + $0x338] sm:$0xff]
    %v604 = vld [vmem:[#allocation7 + $0x340] sm:$0xff]
    %v605 = vld [vmem:[#allocation7 + $0x348] sm:$0xff]
    %v606 = vld [vmem:[#allocation7 + $0x350] sm:$0xff]
    %v607 = vld [vmem:[#allocation7 + $0x358] sm:$0xff]
    %v608 = vld [vmem:[#allocation7 + $0x360] sm:$0xff]
    %v609 = vld [vmem:[#allocation7 + $0x368] sm:$0xff]
    %v610 = vld [vmem:[#allocation7 + $0x370] sm:$0xff]
    %v611 = vld [vmem:[#allocation7 + $0x378] sm:$0xff]
    %v612 = vld [vmem:[#allocation7 + $0x380] sm:$0xff]
    %v613 = vld [vmem:[#allocation7 + $0x388] sm:$0xff]
    %v614 = vld [vmem:[#allocation7 + $0x390] sm:$0xff]
    %v615 = vld [vmem:[#allocation7 + $0x398] sm:$0xff]
    %v616 = vld [vmem:[#allocation7 + $0x3a0] sm:$0xff]
    %v617 = vld [vmem:[#allocation7 + $0x3a8] sm:$0xff]
    %v618 = vld [vmem:[#allocation7 + $0x3b0] sm:$0xff]
    %v619 = vld [vmem:[#allocation7 + $0x3b8] sm:$0xff]
    %v620 = vld [vmem:[#allocation7 + $0x3c0] sm:$0xff]
    %v621 = vld [vmem:[#allocation7 + $0x3c8] sm:$0xff]
    %v622 = vld [vmem:[#allocation7 + $0x3d0] sm:$0xff]
    %v623 = vld [vmem:[#allocation7 + $0x3d8] sm:$0xff]
    %v624 = vld [vmem:[#allocation7 + $0x3e0] sm:$0xff]
    %v625 = vld [vmem:[#allocation7 + $0x3e8] sm:$0xff]
    %v626 = vld [vmem:[#allocation7 + $0x3f0] sm:$0xff]
    %v627 = vld [vmem:[#allocation7 + $0x3f8] sm:$0xff]
    %628 = vmatprep.subr.mxu0 %v501
    %629 = vmatpush1.msra.mxu0 %v500
    %630 = vmatprep.subr.mxu0 %v503
    %631 = vmatpush1.msra.mxu0 %v502
    %632 = vmatprep.subr.mxu0 %v505
    %633 = vmatpush1.msra.mxu0 %v504
    %634 = vmatprep.subr.mxu0 %v507
    %635 = vmatpush1.msra.mxu0 %v506
    %636 = vmatprep.subr.mxu0 %v509
    %637 = vmatpush1.msra.mxu0 %v508
    %638 = vmatprep.subr.mxu0 %v511
    %639 = vmatpush1.msra.mxu0 %v510
    %640 = vmatprep.subr.mxu0 %v513
    %641 = vmatpush1.msra.mxu0 %v512
    %642 = vmatprep.subr.mxu0 %v515
    %643 = vmatpush1.msra.mxu0 %v514
    %644 = vmatprep.subr.mxu0 %v517
    %645 = vmatpush1.msra.mxu0 %v516
    %646 = vmatprep.subr.mxu0 %v519
    %647 = vmatpush1.msra.mxu0 %v518
    %648 = vmatprep.subr.mxu0 %v521
    %649 = vmatpush1.msra.mxu0 %v520
    %650 = vmatprep.subr.mxu0 %v523
    %651 = vmatpush1.msra.mxu0 %v522
    %652 = vmatprep.subr.mxu0 %v525
    %653 = vmatpush1.msra.mxu0 %v524
    %654 = vmatprep.subr.mxu0 %v527
    %655 = vmatpush1.msra.mxu0 %v526
    %656 = vmatprep.subr.mxu0 %v529
    %657 = vmatpush1.msra.mxu0 %v528
    %658 = vmatprep.subr.mxu0 %v531
    %659 = vmatpush1.msra.mxu0 %v530
    %660 = vmatprep.subr.mxu0 %v533
    %661 = vmatpush1.msra.mxu0 %v532
    %662 = vmatprep.subr.mxu0 %v535
    %663 = vmatpush1.msra.mxu0 %v534
    %664 = vmatprep.subr.mxu0 %v537
    %665 = vmatpush1.msra.mxu0 %v536
    %666 = vmatprep.subr.mxu0 %v539
    %667 = vmatpush1.msra.mxu0 %v538
    %668 = vmatprep.subr.mxu0 %v541
    %669 = vmatpush1.msra.mxu0 %v540
    %670 = vmatprep.subr.mxu0 %v543
    %671 = vmatpush1.msra.mxu0 %v542
    %672 = vmatprep.subr.mxu0 %v545
    %673 = vmatpush1.msra.mxu0 %v544
    %674 = vmatprep.subr.mxu0 %v547
    %675 = vmatpush1.msra.mxu0 %v546
    %676 = vmatprep.subr.mxu0 %v549
    %677 = vmatpush1.msra.mxu0 %v548
    %678 = vmatprep.subr.mxu0 %v551
    %679 = vmatpush1.msra.mxu0 %v550
    %680 = vmatprep.subr.mxu0 %v553
    %681 = vmatpush1.msra.mxu0 %v552
    %682 = vmatprep.subr.mxu0 %v555
    %683 = vmatpush1.msra.mxu0 %v554
    %684 = vmatprep.subr.mxu0 %v557
    %685 = vmatpush1.msra.mxu0 %v556
    %686 = vmatprep.subr.mxu0 %v559
    %687 = vmatpush1.msra.mxu0 %v558
    %688 = vmatprep.subr.mxu0 %v561
    %689 = vmatpush1.msra.mxu0 %v560
    %690 = vmatprep.subr.mxu0 %v563
    %691 = vmatpush1.msra.mxu0 %v562
    %692 = vmatprep.mubr.f32.mxu0 %v497
    %693 = vmatmul.mubr.f32.gmra.mrb[0].mxu0 %v496
    %v694 = vpop.f32.mrb[0].mxu0
    %v695 = vadd.f32 0.0, %v694
    %v696 = vpop.f32.mrb[0].mxu0
    %v697 = vadd.f32 0.0, %v696
    %698 = vdwg.mxu0
    %699 = vmatprep.subr.mxu0 %v565
    %700 = vmatpush1.msra.mxu0 %v564
    %701 = vmatprep.subr.mxu0 %v567
    %702 = vmatpush1.msra.mxu0 %v566
    %703 = vmatprep.subr.mxu0 %v569
    %704 = vmatpush1.msra.mxu0 %v568
    %705 = vmatprep.subr.mxu0 %v571
    %706 = vmatpush1.msra.mxu0 %v570
    %707 = vmatprep.subr.mxu0 %v573
    %708 = vmatpush1.msra.mxu0 %v572
    %709 = vmatprep.subr.mxu0 %v575
    %710 = vmatpush1.msra.mxu0 %v574
    %711 = vmatprep.subr.mxu0 %v577
    %712 = vmatpush1.msra.mxu0 %v576
    %713 = vmatprep.subr.mxu0 %v579
    %714 = vmatpush1.msra.mxu0 %v578
    %715 = vmatprep.subr.mxu0 %v581
    %716 = vmatpush1.msra.mxu0 %v580
    %717 = vmatprep.subr.mxu0 %v583
    %718 = vmatpush1.msra.mxu0 %v582
    %719 = vmatprep.subr.mxu0 %v585
    %720 = vmatpush1.msra.mxu0 %v584
    %721 = vmatprep.subr.mxu0 %v587
    %722 = vmatpush1.msra.mxu0 %v586
    %723 = vmatprep.subr.mxu0 %v589
    %724 = vmatpush1.msra.mxu0 %v588
    %725 = vmatprep.subr.mxu0 %v591
    %726 = vmatpush1.msra.mxu0 %v590
    %727 = vmatprep.subr.mxu0 %v593
    %728 = vmatpush1.msra.mxu0 %v592
    %729 = vmatprep.subr.mxu0 %v595
    %730 = vmatpush1.msra.mxu0 %v594
    %731 = vmatprep.subr.mxu0 %v597
    %732 = vmatpush1.msra.mxu0 %v596
    %733 = vmatprep.subr.mxu0 %v599
    %734 = vmatpush1.msra.mxu0 %v598
    %735 = vmatprep.subr.mxu0 %v601
    %736 = vmatpush1.msra.mxu0 %v600
    %737 = vmatprep.subr.mxu0 %v603
    %738 = vmatpush1.msra.mxu0 %v602
    %739 = vmatprep.subr.mxu0 %v605
    %740 = vmatpush1.msra.mxu0 %v604
    %741 = vmatprep.subr.mxu0 %v607
    %742 = vmatpush1.msra.mxu0 %v606
    %743 = vmatprep.subr.mxu0 %v609
    %744 = vmatpush1.msra.mxu0 %v608
    %745 = vmatprep.subr.mxu0 %v611
    %746 = vmatpush1.msra.mxu0 %v610
    %747 = vmatprep.subr.mxu0 %v613
    %748 = vmatpush1.msra.mxu0 %v612
    %749 = vmatprep.subr.mxu0 %v615
    %750 = vmatpush1.msra.mxu0 %v614
    %751 = vmatprep.subr.mxu0 %v617
    %752 = vmatpush1.msra.mxu0 %v616
    %753 = vmatprep.subr.mxu0 %v619
    %754 = vmatpush1.msra.mxu0 %v618
    %755 = vmatprep.subr.mxu0 %v621
    %756 = vmatpush1.msra.mxu0 %v620
    %757 = vmatprep.subr.mxu0 %v623
    %758 = vmatpush1.msra.mxu0 %v622
    %759 = vmatprep.subr.mxu0 %v625
    %760 = vmatpush1.msra.mxu0 %v624
    %761 = vmatprep.subr.mxu0 %v627
    %762 = vmatpush1.msra.mxu0 %v626
    %763 = vmatprep.mubr.f32.mxu0 %v499
    %764 = vmatmul.mubr.f32.gmra.mrb[0].mxu0 %v498
    %v765 = vpop.f32.mrb[0].mxu0
    %v766 = vadd.f32 %v695, %v765
    %v767 = vpop.f32.mrb[0].mxu0
    %v768 = vadd.f32 %v697, %v767
    %769 = vdwg.mxu0
    %s770 = scalar_lea.vmem [#allocation13], 1
    %v771 = vld [vmem:[%s770] ss:$8 sm:$0x3]
    %s772 = scalar_lea.vmem [#allocation13], 5
    %v773 = vld [vmem:[%s772] ss:$8 sm:$0x3]
    %v774 = vrot.slane %v766, 4
    %v775 = vadd.f32 %v766, %v774
    %v776 = vrot.slane %v775, 2
    %v777 = vadd.f32 %v775, %v776
    %v778 = vrot.slane %v777, 1
    %v779 = vadd.f32 %v777, %v778
    %v780 = vrot.slane %v768, 4
    %v781 = vadd.f32 %v768, %v780
    %v782 = vrot.slane %v781, 2
    %v783 = vadd.f32 %v781, %v782
    %v784 = vrot.slane %v783, 1
    %v785 = vadd.f32 %v783, %v784
    %v786 = vmul.f32 %v779, 0.125
    %v787 = vmul.f32 %v785, 0.125
    %v788 = vmul.f32 %v766, %v766
    %v789 = vmul.f32 %v768, %v768
    %v790 = vrot.slane %v788, 4
    %v791 = vadd.f32 %v788, %v790
    %v792 = vrot.slane %v791, 2
    %v793 = vadd.f32 %v791, %v792
    %v794 = vrot.slane %v793, 1
    %v795 = vadd.f32 %v793, %v794
    %v796 = vrot.slane %v789, 4
    %v797 = vadd.f32 %v789, %v796
    %v798 = vrot.slane %v797, 2
    %v799 = vadd.f32 %v797, %v798
    %v800 = vrot.slane %v799, 1
    %v801 = vadd.f32 %v799, %v800
    %v802 = vmul.f32 %v795, 0.125
    %v803 = vmul.f32 %v801, 0.125
    %v804 = vmul.f32 %v786, %v786
    %v805 = vmul.f32 %v787, %v787
    %v806 = vsub.f32 %v802, %v804
    %v807 = vsub.f32 %v803, %v805
    %v808 = vadd.f32 %v806, 1e-05
    %v809 = vadd.f32 %v807, 1e-05
    %v810 = vrsqrt.pop %v808
    %v811 = vrsqrt.pop %v809
    %v814 = vcombine.low %v810, %v811
    %v816 = vunpack.c.l.s4 1966171168
    %v817 = vunpack.c.0.s8 %v816
    %v818 = vlaneseq
    %v819 = vshrl.u32 %v818, 7
    %v820 = vsub.s32 %v817, %v819
    %v821 = vrot.slane %v814, %v820
    %v823 = vunpack.c.l.s4 1966171168
    %v824 = vunpack.c.0.s8 %v823
    %v825 = vlaneseq
    %v826 = vshrl.u32 %v825, 7
    %v827 = vsub.s32 %v824, %v826
    %v828 = vrot.slane %v821, %v827
    %v830 = vmul.f32 %v771, %v828
    %v832 = vlaneseq
    %v833 = vshrl.u32 %v832, 7
    %v834 = vsub.s32 0, %v833
    %v835 = vrot.slane %v830, %v834
    %v836 = vlaneseq
    %v837 = vshrl.u32 %v836, 7
    %v838 = vsub.s32 1, %v837
    %v839 = vrot.slane %v830, %v838
    %v842 = vmul.f32 %v786, %v835
    %v843 = vmul.f32 %v787, %v839
    %v846 = vcombine.low %v842, %v843
    %v848 = vunpack.c.l.s4 1966171168
    %v849 = vunpack.c.0.s8 %v848
    %v850 = vlaneseq
    %v851 = vshrl.u32 %v850, 7
    %v852 = vsub.s32 %v849, %v851
    %v853 = vrot.slane %v846, %v852
    %v855 = vunpack.c.l.s4 1966171168
    %v856 = vunpack.c.0.s8 %v855
    %v857 = vlaneseq
    %v858 = vshrl.u32 %v857, 7
    %v859 = vsub.s32 %v856, %v858
    %v860 = vrot.slane %v853, %v859
    %v862 = vsub.f32 %v773, %v860
    %v863 = vmul.f32 %v766, %v835
    %v864 = vmul.f32 %v768, %v839
    %v866 = vlaneseq
    %v867 = vshrl.u32 %v866, 7
    %v868 = vsub.s32 0, %v867
    %v869 = vrot.slane %v862, %v868
    %v870 = vlaneseq
    %v871 = vshrl.u32 %v870, 7
    %v872 = vsub.s32 1, %v871
    %v873 = vrot.slane %v862, %v872
    %v876 = vadd.f32 %v863, %v869
    %v877 = vadd.f32 %v864, %v873
    %v878 = vmul.f32 %v876, 0.2
    %v879 = vmul.f32 %v877, 0.2
    %v880 = vmax.f32 %v876, %v878
    %v881 = vmax.f32 %v877, %v879
    %v882 = vld [vmem:[#allocation8] sm:$0xff]
    %v883 = vld [vmem:[#allocation8 + $0x8] sm:$0xff]
    %v884 = vld [vmem:[#allocation8 + $0x10] sm:$0xff]
    %v885 = vld [vmem:[#allocation8 + $0x18] sm:$0xff]
    %v886 = vld [vmem:[#allocation8 + $0x20] sm:$0xff]
    %v887 = vld [vmem:[#allocation8 + $0x28] sm:$0xff]
    %v888 = vld [vmem:[#allocation8 + $0x30] sm:$0xff]
    %v889 = vld [vmem:[#allocation8 + $0x38] sm:$0xff]
    %v890 = vld [vmem:[#allocation8 + $0x40] sm:$0xff]
    %v891 = vld [vmem:[#allocation8 + $0x48] sm:$0xff]
    %v892 = vld [vmem:[#allocation8 + $0x50] sm:$0xff]
    %v893 = vld [vmem:[#allocation8 + $0x58] sm:$0xff]
    %v894 = vld [vmem:[#allocation8 + $0x60] sm:$0xff]
    %v895 = vld [vmem:[#allocation8 + $0x68] sm:$0xff]
    %v896 = vld [vmem:[#allocation8 + $0x70] sm:$0xff]
    %v897 = vld [vmem:[#allocation8 + $0x78] sm:$0xff]
    %v898 = vld [vmem:[#allocation8 + $0x80] sm:$0xff]
    %v899 = vld [vmem:[#allocation8 + $0x88] sm:$0xff]
    %v900 = vld [vmem:[#allocation8 + $0x90] sm:$0xff]
    %v901 = vld [vmem:[#allocation8 + $0x98] sm:$0xff]
    %v902 = vld [vmem:[#allocation8 + $0xa0] sm:$0xff]
    %v903 = vld [vmem:[#allocation8 + $0xa8] sm:$0xff]
    %v904 = vld [vmem:[#allocation8 + $0xb0] sm:$0xff]
    %v905 = vld [vmem:[#allocation8 + $0xb8] sm:$0xff]
    %v906 = vld [vmem:[#allocation8 + $0xc0] sm:$0xff]
    %v907 = vld [vmem:[#allocation8 + $0xc8] sm:$0xff]
    %v908 = vld [vmem:[#allocation8 + $0xd0] sm:$0xff]
    %v909 = vld [vmem:[#allocation8 + $0xd8] sm:$0xff]
    %v910 = vld [vmem:[#allocation8 + $0xe0] sm:$0xff]
    %v911 = vld [vmem:[#allocation8 + $0xe8] sm:$0xff]
    %v912 = vld [vmem:[#allocation8 + $0xf0] sm:$0xff]
    %v913 = vld [vmem:[#allocation8 + $0xf8] sm:$0xff]
    %914 = vmatprep.subr.mxu0 0.0
    %915 = vmatpush1.msra.mxu0 %v882
    %916 = vmatprep.subr.mxu0 0.0
    %917 = vmatpush1.msra.mxu0 %v883
    %918 = vmatprep.subr.mxu0 0.0
    %919 = vmatpush1.msra.mxu0 %v884
    %920 = vmatprep.subr.mxu0 0.0
    %921 = vmatpush1.msra.mxu0 %v885
    %922 = vmatprep.subr.mxu0 0.0
    %923 = vmatpush1.msra.mxu0 %v886
    %924 = vmatprep.subr.mxu0 0.0
    %925 = vmatpush1.msra.mxu0 %v887
    %926 = vmatprep.subr.mxu0 0.0
    %927 = vmatpush1.msra.mxu0 %v888
    %928 = vmatprep.subr.mxu0 0.0
    %929 = vmatpush1.msra.mxu0 %v889
    %930 = vmatprep.subr.mxu0 0.0
    %931 = vmatpush1.msra.mxu0 %v890
    %932 = vmatprep.subr.mxu0 0.0
    %933 = vmatpush1.msra.mxu0 %v891
    %934 = vmatprep.subr.mxu0 0.0
    %935 = vmatpush1.msra.mxu0 %v892
    %936 = vmatprep.subr.mxu0 0.0
    %937 = vmatpush1.msra.mxu0 %v893
    %938 = vmatprep.subr.mxu0 0.0
    %939 = vmatpush1.msra.mxu0 %v894
    %940 = vmatprep.subr.mxu0 0.0
    %941 = vmatpush1.msra.mxu0 %v895
    %942 = vmatprep.subr.mxu0 0.0
    %943 = vmatpush1.msra.mxu0 %v896
    %944 = vmatprep.subr.mxu0 0.0
    %945 = vmatpush1.msra.mxu0 %v897
    %946 = vmatprep.subr.mxu0 0.0
    %947 = vmatpush1.msra.mxu0 %v898
    %948 = vmatprep.subr.mxu0 0.0
    %949 = vmatpush1.msra.mxu0 %v899
    %950 = vmatprep.subr.mxu0 0.0
    %951 = vmatpush1.msra.mxu0 %v900
    %952 = vmatprep.subr.mxu0 0.0
    %953 = vmatpush1.msra.mxu0 %v901
    %954 = vmatprep.subr.mxu0 0.0
    %955 = vmatpush1.msra.mxu0 %v902
    %956 = vmatprep.subr.mxu0 0.0
    %957 = vmatpush1.msra.mxu0 %v903
    %958 = vmatprep.subr.mxu0 0.0
    %959 = vmatpush1.msra.mxu0 %v904
    %960 = vmatprep.subr.mxu0 0.0
    %961 = vmatpush1.msra.mxu0 %v905
    %962 = vmatprep.subr.mxu0 0.0
    %963 = vmatpush1.msra.mxu0 %v906
    %964 = vmatprep.subr.mxu0 0.0
    %965 = vmatpush1.msra.mxu0 %v907
    %966 = vmatprep.subr.mxu0 0.0
    %967 = vmatpush1.msra.mxu0 %v908
    %968 = vmatprep.subr.mxu0 0.0
    %969 = vmatpush1.msra.mxu0 %v909
    %970 = vmatprep.subr.mxu0 0.0
    %971 = vmatpush1.msra.mxu0 %v910
    %972 = vmatprep.subr.mxu0 0.0
    %973 = vmatpush1.msra.mxu0 %v911
    %974 = vmatprep.subr.mxu0 0.0
    %975 = vmatpush1.msra.mxu0 %v912
    %976 = vmatprep.subr.mxu0 0.0
    %977 = vmatpush1.msra.mxu0 %v913
    %978 = vmatprep.mubr.f32.mxu0 %v881
    %979 = vmatmul.mubr.f32.gmra.mrb[0].mxu0 %v880
    %v980 = vpop.f32.mrb[0].mxu0
    %v981 = vadd.f32 0.0, %v980
    %v982 = vpop.f32.mrb[0].mxu0
    %983 = vdwg.mxu0
    %v984 = vld [vmem:[#allocation13 + $0x2] ss:$0 sm:$0xff]
    %v985 = vld [vmem:[#allocation13 + $0x6] ss:$0 sm:$0xff]
    %v986 = vrot.slane %v981, 4
    %v987 = vadd.f32 %v981, %v986
    %v988 = vrot.slane %v987, 2
    %v989 = vadd.f32 %v987, %v988
    %v990 = vrot.slane %v989, 1
    %v991 = vadd.f32 %v989, %v990
    %v992 = vmul.f32 %v991, 0.125
    %v993 = vmul.f32 %v981, %v981
    %v994 = vrot.slane %v993, 4
    %v995 = vadd.f32 %v993, %v994
    %v996 = vrot.slane %v995, 2
    %v997 = vadd.f32 %v995, %v996
    %v998 = vrot.slane %v997, 1
    %v999 = vadd.f32 %v997, %v998
    %v1000 = vmul.f32 %v999, 0.125
    %v1001 = vmul.f32 %v992, %v992
    %v1002 = vsub.f32 %v1000, %v1001
    %v1003 = vadd.f32 %v1002, 1e-05
    %v1004 = vrsqrt.pop %v1003
    %v1005 = vmul.f32 %v984, %v1004
    %v1006 = vmul.f32 %v992, %v1005
    %v1007 = vsub.f32 %v985, %v1006
    %v1008 = vmul.f32 %v981, %v1005
    %v1009 = vadd.f32 %v1008, %v1007
    %v1010 = vmul.f32 %v1009, 0.2
    %v1011 = vmax.f32 %v1009, %v1010
    %v1012 = vld [vmem:[#allocation10] sm:$0xff]
    %v1013 = vld [vmem:[#allocation10 + $0x8] sm:$0xff]
    %v1014 = vld [vmem:[#allocation10 + $0x10] sm:$0xff]
    %v1015 = vld [vmem:[#allocation10 + $0x18] sm:$0xff]
    %v1016 = vld [vmem:[#allocation10 + $0x20] sm:$0xff]
    %v1017 = vld [vmem:[#allocation10 + $0x28] sm:$0xff]
    %v1018 = vld [vmem:[#allocation10 + $0x30] sm:$0xff]
    %v1019 = vld [vmem:[#allocation10 + $0x38] sm:$0xff]
    %v1020 = vld [vmem:[#allocation10 + $0x40] sm:$0xff]
    %v1021 = vld [vmem:[#allocation10 + $0x48] sm:$0xff]
    %v1022 = vld [vmem:[#allocation10 + $0x50] sm:$0xff]
    %v1023 = vld [vmem:[#allocation10 + $0x58] sm:$0xff]
    %v1024 = vld [vmem:[#allocation10 + $0x60] sm:$0xff]
    %v1025 = vld [vmem:[#allocation10 + $0x68] sm:$0xff]
    %v1026 = vld [vmem:[#allocation10 + $0x70] sm:$0xff]
    %v1027 = vld [vmem:[#allocation10 + $0x78] sm:$0xff]
    %v1028 = vld [vmem:[#allocation10 + $0x80] sm:$0xff]
    %v1029 = vld [vmem:[#allocation10 + $0x88] sm:$0xff]
    %v1030 = vld [vmem:[#allocation10 + $0x90] sm:$0xff]
    %v1031 = vld [vmem:[#allocation10 + $0x98] sm:$0xff]
    %v1032 = vld [vmem:[#allocation10 + $0xa0] sm:$0xff]
    %v1033 = vld [vmem:[#allocation10 + $0xa8] sm:$0xff]
    %v1034 = vld [vmem:[#allocation10 + $0xb0] sm:$0xff]
    %v1035 = vld [vmem:[#allocation10 + $0xb8] sm:$0xff]
    %v1036 = vld [vmem:[#allocation10 + $0xc0] sm:$0xff]
    %v1037 = vld [vmem:[#allocation10 + $0xc8] sm:$0xff]
    %v1038 = vld [vmem:[#allocation10 + $0xd0] sm:$0xff]
    %v1039 = vld [vmem:[#allocation10 + $0xd8] sm:$0xff]
    %v1040 = vld [vmem:[#allocation10 + $0xe0] sm:$0xff]
    %v1041 = vld [vmem:[#allocation10 + $0xe8] sm:$0xff]
    %v1042 = vld [vmem:[#allocation10 + $0xf0] sm:$0xff]
    %v1043 = vld [vmem:[#allocation10 + $0xf8] sm:$0xff]
    %1044 = vmatprep.subr.mxu0 %v1013
    %1045 = vmatpush1.msra.mxu0 %v1012
    %1046 = vmatprep.subr.mxu0 %v1015
    %1047 = vmatpush1.msra.mxu0 %v1014
    %1048 = vmatprep.subr.mxu0 %v1017
    %1049 = vmatpush1.msra.mxu0 %v1016
    %1050 = vmatprep.subr.mxu0 %v1019
    %1051 = vmatpush1.msra.mxu0 %v1018
    %1052 = vmatprep.subr.mxu0 %v1021
    %1053 = vmatpush1.msra.mxu0 %v1020
    %1054 = vmatprep.subr.mxu0 %v1023
    %1055 = vmatpush1.msra.mxu0 %v1022
    %1056 = vmatprep.subr.mxu0 %v1025
    %1057 = vmatpush1.msra.mxu0 %v1024
    %1058 = vmatprep.subr.mxu0 %v1027
    %1059 = vmatpush1.msra.mxu0 %v1026
    %1060 = vmatprep.subr.mxu0 %v1029
    %1061 = vmatpush1.msra.mxu0 %v1028
    %1062 = vmatprep.subr.mxu0 %v1031
    %1063 = vmatpush1.msra.mxu0 %v1030
    %1064 = vmatprep.subr.mxu0 %v1033
    %1065 = vmatpush1.msra.mxu0 %v1032
    %1066 = vmatprep.subr.mxu0 %v1035
    %1067 = vmatpush1.msra.mxu0 %v1034
    %1068 = vmatprep.subr.mxu0 %v1037
    %1069 = vmatpush1.msra.mxu0 %v1036
    %1070 = vmatprep.subr.mxu0 %v1039
    %1071 = vmatpush1.msra.mxu0 %v1038
    %1072 = vmatprep.subr.mxu0 %v1041
    %1073 = vmatpush1.msra.mxu0 %v1040
    %1074 = vmatprep.subr.mxu0 %v1043
    %1075 = vmatpush1.msra.mxu0 %v1042
    %1076 = vmatprep.subr.mxu0 0.0
    %1077 = vmatpush1.msra.mxu0 0.0
    %1078 = vmatprep.subr.mxu0 0.0
    %1079 = vmatpush1.msra.mxu0 0.0
    %1080 = vmatprep.subr.mxu0 0.0
    %1081 = vmatpush1.msra.mxu0 0.0
    %1082 = vmatprep.subr.mxu0 0.0
    %1083 = vmatpush1.msra.mxu0 0.0
    %1084 = vmatprep.subr.mxu0 0.0
    %1085 = vmatpush1.msra.mxu0 0.0
    %1086 = vmatprep.subr.mxu0 0.0
    %1087 = vmatpush1.msra.mxu0 0.0
    %1088 = vmatprep.subr.mxu0 0.0
    %1089 = vmatpush1.msra.mxu0 0.0
    %1090 = vmatprep.subr.mxu0 0.0
    %1091 = vmatpush1.msra.mxu0 0.0
    %1092 = vmatprep.subr.mxu0 0.0
    %1093 = vmatpush1.msra.mxu0 0.0
    %1094 = vmatprep.subr.mxu0 0.0
    %1095 = vmatpush1.msra.mxu0 0.0
    %1096 = vmatprep.subr.mxu0 0.0
    %1097 = vmatpush1.msra.mxu0 0.0
    %1098 = vmatprep.subr.mxu0 0.0
    %1099 = vmatpush1.msra.mxu0 0.0
    %1100 = vmatprep.subr.mxu0 0.0
    %1101 = vmatpush1.msra.mxu0 0.0
    %1102 = vmatprep.subr.mxu0 0.0
    %1103 = vmatpush1.msra.mxu0 0.0
    %1104 = vmatprep.subr.mxu0 0.0
    %1105 = vmatpush1.msra.mxu0 0.0
    %1106 = vmatprep.subr.mxu0 0.0
    %1107 = vmatpush1.msra.mxu0 0.0
    %1108 = vmatprep.mubr.f32.mxu0 0.0
    %1109 = vmatmul.mubr.f32.gmra.mrb[0].mxu0 %v1011
    %v1110 = vpop.f32.mrb[0].mxu0
    %v1111 = vadd.f32 0.0, %v1110
    %v1112 = vpop.f32.mrb[0].mxu0
    %v1113 = vadd.f32 0.0, %v1112
    %1114 = vdwg.mxu0
    %s1115 = scalar_lea.vmem [#allocation13], 3
    %v1116 = vld [vmem:[%s1115] ss:$8 sm:$0x3]
    %s1117 = scalar_lea.vmem [#allocation13], 7
    %v1118 = vld [vmem:[%s1117] ss:$8 sm:$0x3]
    %v1119 = vrot.slane %v1111, 4
    %v1120 = vadd.f32 %v1111, %v1119
    %v1121 = vrot.slane %v1120, 2
    %v1122 = vadd.f32 %v1120, %v1121
    %v1123 = vrot.slane %v1122, 1
    %v1124 = vadd.f32 %v1122, %v1123
    %v1125 = vrot.slane %v1113, 4
    %v1126 = vadd.f32 %v1113, %v1125
    %v1127 = vrot.slane %v1126, 2
    %v1128 = vadd.f32 %v1126, %v1127
    %v1129 = vrot.slane %v1128, 1
    %v1130 = vadd.f32 %v1128, %v1129
    %v1131 = vmul.f32 %v1124, 0.125
    %v1132 = vmul.f32 %v1130, 0.125
    %v1133 = vmul.f32 %v1111, %v1111
    %v1134 = vmul.f32 %v1113, %v1113
    %v1135 = vrot.slane %v1133, 4
    %v1136 = vadd.f32 %v1133, %v1135
    %v1137 = vrot.slane %v1136, 2
    %v1138 = vadd.f32 %v1136, %v1137
    %v1139 = vrot.slane %v1138, 1
    %v1140 = vadd.f32 %v1138, %v1139
    %v1141 = vrot.slane %v1134, 4
    %v1142 = vadd.f32 %v1134, %v1141
    %v1143 = vrot.slane %v1142, 2
    %v1144 = vadd.f32 %v1142, %v1143
    %v1145 = vrot.slane %v1144, 1
    %v1146 = vadd.f32 %v1144, %v1145
    %v1147 = vmul.f32 %v1140, 0.125
    %v1148 = vmul.f32 %v1146, 0.125
    %v1149 = vmul.f32 %v1131, %v1131
    %v1150 = vmul.f32 %v1132, %v1132
    %v1151 = vsub.f32 %v1147, %v1149
    %v1152 = vsub.f32 %v1148, %v1150
    %v1153 = vadd.f32 %v1151, 1e-05
    %v1154 = vadd.f32 %v1152, 1e-05
    %v1155 = vrsqrt.pop %v1153
    %v1156 = vrsqrt.pop %v1154
    %v1159 = vcombine.low %v1155, %v1156
    %v1161 = vunpack.c.l.s4 1966171168
    %v1162 = vunpack.c.0.s8 %v1161
    %v1163 = vlaneseq
    %v1164 = vshrl.u32 %v1163, 7
    %v1165 = vsub.s32 %v1162, %v1164
    %v1166 = vrot.slane %v1159, %v1165
    %v1168 = vunpack.c.l.s4 1966171168
    %v1169 = vunpack.c.0.s8 %v1168
    %v1170 = vlaneseq
    %v1171 = vshrl.u32 %v1170, 7
    %v1172 = vsub.s32 %v1169, %v1171
    %v1173 = vrot.slane %v1166, %v1172
    %v1175 = vmul.f32 %v1116, %v1173
    %v1177 = vlaneseq
    %v1178 = vshrl.u32 %v1177, 7
    %v1179 = vsub.s32 0, %v1178
    %v1180 = vrot.slane %v1175, %v1179
    %v1181 = vlaneseq
    %v1182 = vshrl.u32 %v1181, 7
    %v1183 = vsub.s32 1, %v1182
    %v1184 = vrot.slane %v1175, %v1183
    %v1187 = vmul.f32 %v1131, %v1180
    %v1188 = vmul.f32 %v1132, %v1184
    %v1191 = vcombine.low %v1187, %v1188
    %v1193 = vunpack.c.l.s4 1966171168
    %v1194 = vunpack.c.0.s8 %v1193
    %v1195 = vlaneseq
    %v1196 = vshrl.u32 %v1195, 7
    %v1197 = vsub.s32 %v1194, %v1196
    %v1198 = vrot.slane %v1191, %v1197
    %v1200 = vunpack.c.l.s4 1966171168
    %v1201 = vunpack.c.0.s8 %v1200
    %v1202 = vlaneseq
    %v1203 = vshrl.u32 %v1202, 7
    %v1204 = vsub.s32 %v1201, %v1203
    %v1205 = vrot.slane %v1198, %v1204
    %v1207 = vsub.f32 %v1118, %v1205
    %v1208 = vmul.f32 %v1111, %v1180
    %v1209 = vmul.f32 %v1113, %v1184
    %v1211 = vlaneseq
    %v1212 = vshrl.u32 %v1211, 7
    %v1213 = vsub.s32 0, %v1212
    %v1214 = vrot.slane %v1207, %v1213
    %v1215 = vlaneseq
    %v1216 = vshrl.u32 %v1215, 7
    %v1217 = vsub.s32 1, %v1216
    %v1218 = vrot.slane %v1207, %v1217
    %v1221 = vadd.f32 %v1208, %v1214
    %v1222 = vadd.f32 %v1209, %v1218
    %v1223 = vmul.f32 %v1221, 0.2
    %v1224 = vmul.f32 %v1222, 0.2
    %v1225 = vmax.f32 %v1221, %v1223
    %v1226 = vmax.f32 %v1222, %v1224
    %v1227 = vld [vmem:[#allocation11] sm:$0xff]
    %v1228 = vld [vmem:[#allocation11 + $0x8] sm:$0xff]
    %v1229 = vld [vmem:[#allocation11 + $0x10] sm:$0xff]
    %v1230 = vld [vmem:[#allocation11 + $0x18] sm:$0xff]
    %v1231 = vld [vmem:[#allocation11 + $0x20] sm:$0xff]
    %v1232 = vld [vmem:[#allocation11 + $0x28] sm:$0xff]
    %v1233 = vld [vmem:[#allocation11 + $0x30] sm:$0xff]
    %v1234 = vld [vmem:[#allocation11 + $0x38] sm:$0xff]
    %v1235 = vld [vmem:[#allocation11 + $0x40] sm:$0xff]
    %v1236 = vld [vmem:[#allocation11 + $0x48] sm:$0xff]
    %v1237 = vld [vmem:[#allocation11 + $0x50] sm:$0xff]
    %v1238 = vld [vmem:[#allocation11 + $0x58] sm:$0xff]
    %v1239 = vld [vmem:[#allocation11 + $0x60] sm:$0xff]
    %v1240 = vld [vmem:[#allocation11 + $0x68] sm:$0xff]
    %v1241 = vld [vmem:[#allocation11 + $0x70] sm:$0xff]
    %v1242 = vld [vmem:[#allocation11 + $0x78] sm:$0xff]
    %v1243 = vld [vmem:[#allocation11 + $0x80] sm:$0xff]
    %v1244 = vld [vmem:[#allocation11 + $0x88] sm:$0xff]
    %v1245 = vld [vmem:[#allocation11 + $0x90] sm:$0xff]
    %v1246 = vld [vmem:[#allocation11 + $0x98] sm:$0xff]
    %v1247 = vld [vmem:[#allocation11 + $0xa0] sm:$0xff]
    %v1248 = vld [vmem:[#allocation11 + $0xa8] sm:$0xff]
    %v1249 = vld [vmem:[#allocation11 + $0xb0] sm:$0xff]
    %v1250 = vld [vmem:[#allocation11 + $0xb8] sm:$0xff]
    %v1251 = vld [vmem:[#allocation11 + $0xc0] sm:$0xff]
    %v1252 = vld [vmem:[#allocation11 + $0xc8] sm:$0xff]
    %v1253 = vld [vmem:[#allocation11 + $0xd0] sm:$0xff]
    %v1254 = vld [vmem:[#allocation11 + $0xd8] sm:$0xff]
    %v1255 = vld [vmem:[#allocation11 + $0xe0] sm:$0xff]
    %v1256 = vld [vmem:[#allocation11 + $0xe8] sm:$0xff]
    %v1257 = vld [vmem:[#allocation11 + $0xf0] sm:$0xff]
    %v1258 = vld [vmem:[#allocation11 + $0xf8] sm:$0xff]
    %v1259 = vld [vmem:[#allocation11 + $0x100] sm:$0xff]
    %v1260 = vld [vmem:[#allocation11 + $0x108] sm:$0xff]
    %v1261 = vld [vmem:[#allocation11 + $0x110] sm:$0xff]
    %v1262 = vld [vmem:[#allocation11 + $0x118] sm:$0xff]
    %v1263 = vld [vmem:[#allocation11 + $0x120] sm:$0xff]
    %v1264 = vld [vmem:[#allocation11 + $0x128] sm:$0xff]
    %v1265 = vld [vmem:[#allocation11 + $0x130] sm:$0xff]
    %v1266 = vld [vmem:[#allocation11 + $0x138] sm:$0xff]
    %v1267 = vld [vmem:[#allocation11 + $0x140] sm:$0xff]
    %v1268 = vld [vmem:[#allocation11 + $0x148] sm:$0xff]
    %v1269 = vld [vmem:[#allocation11 + $0x150] sm:$0xff]
    %v1270 = vld [vmem:[#allocation11 + $0x158] sm:$0xff]
    %v1271 = vld [vmem:[#allocation11 + $0x160] sm:$0xff]
    %v1272 = vld [vmem:[#allocation11 + $0x168] sm:$0xff]
    %v1273 = vld [vmem:[#allocation11 + $0x170] sm:$0xff]
    %v1274 = vld [vmem:[#allocation11 + $0x178] sm:$0xff]
    %v1275 = vld [vmem:[#allocation11 + $0x180] sm:$0xff]
    %v1276 = vld [vmem:[#allocation11 + $0x188] sm:$0xff]
    %v1277 = vld [vmem:[#allocation11 + $0x190] sm:$0xff]
    %v1278 = vld [vmem:[#allocation11 + $0x198] sm:$0xff]
    %v1279 = vld [vmem:[#allocation11 + $0x1a0] sm:$0xff]
    %v1280 = vld [vmem:[#allocation11 + $0x1a8] sm:$0xff]
    %v1281 = vld [vmem:[#allocation11 + $0x1b0] sm:$0xff]
    %v1282 = vld [vmem:[#allocation11 + $0x1b8] sm:$0xff]
    %v1283 = vld [vmem:[#allocation11 + $0x1c0] sm:$0xff]
    %v1284 = vld [vmem:[#allocation11 + $0x1c8] sm:$0xff]
    %v1285 = vld [vmem:[#allocation11 + $0x1d0] sm:$0xff]
    %v1286 = vld [vmem:[#allocation11 + $0x1d8] sm:$0xff]
    %v1287 = vld [vmem:[#allocation11 + $0x1e0] sm:$0xff]
    %v1288 = vld [vmem:[#allocation11 + $0x1e8] sm:$0xff]
    %v1289 = vld [vmem:[#allocation11 + $0x1f0] sm:$0xff]
    %v1290 = vld [vmem:[#allocation11 + $0x1f8] sm:$0xff]
    %v1291 = vld [vmem:[#allocation11 + $0x200] sm:$0xff]
    %v1292 = vld [vmem:[#allocation11 + $0x208] sm:$0xff]
    %v1293 = vld [vmem:[#allocation11 + $0x210] sm:$0xff]
    %v1294 = vld [vmem:[#allocation11 + $0x218] sm:$0xff]
    %v1295 = vld [vmem:[#allocation11 + $0x220] sm:$0xff]
    %v1296 = vld [vmem:[#allocation11 + $0x228] sm:$0xff]
    %v1297 = vld [vmem:[#allocation11 + $0x230] sm:$0xff]
    %v1298 = vld [vmem:[#allocation11 + $0x238] sm:$0xff]
    %v1299 = vld [vmem:[#allocation11 + $0x240] sm:$0xff]
    %v1300 = vld [vmem:[#allocation11 + $0x248] sm:$0xff]
    %v1301 = vld [vmem:[#allocation11 + $0x250] sm:$0xff]
    %v1302 = vld [vmem:[#allocation11 + $0x258] sm:$0xff]
    %v1303 = vld [vmem:[#allocation11 + $0x260] sm:$0xff]
    %v1304 = vld [vmem:[#allocation11 + $0x268] sm:$0xff]
    %v1305 = vld [vmem:[#allocation11 + $0x270] sm:$0xff]
    %v1306 = vld [vmem:[#allocation11 + $0x278] sm:$0xff]
    %v1307 = vld [vmem:[#allocation11 + $0x280] sm:$0xff]
    %v1308 = vld [vmem:[#allocation11 + $0x288] sm:$0xff]
    %v1309 = vld [vmem:[#allocation11 + $0x290] sm:$0xff]
    %v1310 = vld [vmem:[#allocation11 + $0x298] sm:$0xff]
    %v1311 = vld [vmem:[#allocation11 + $0x2a0] sm:$0xff]
    %v1312 = vld [vmem:[#allocation11 + $0x2a8] sm:$0xff]
    %v1313 = vld [vmem:[#allocation11 + $0x2b0] sm:$0xff]
    %v1314 = vld [vmem:[#allocation11 + $0x2b8] sm:$0xff]
    %v1315 = vld [vmem:[#allocation11 + $0x2c0] sm:$0xff]
    %v1316 = vld [vmem:[#allocation11 + $0x2c8] sm:$0xff]
    %v1317 = vld [vmem:[#allocation11 + $0x2d0] sm:$0xff]
    %v1318 = vld [vmem:[#allocation11 + $0x2d8] sm:$0xff]
    %v1319 = vld [vmem:[#allocation11 + $0x2e0] sm:$0xff]
    %v1320 = vld [vmem:[#allocation11 + $0x2e8] sm:$0xff]
    %v1321 = vld [vmem:[#allocation11 + $0x2f0] sm:$0xff]
    %v1322 = vld [vmem:[#allocation11 + $0x2f8] sm:$0xff]
    %v1323 = vld [vmem:[#allocation11 + $0x300] sm:$0xff]
    %v1324 = vld [vmem:[#allocation11 + $0x308] sm:$0xff]
    %v1325 = vld [vmem:[#allocation11 + $0x310] sm:$0xff]
    %v1326 = vld [vmem:[#allocation11 + $0x318] sm:$0xff]
    %v1327 = vld [vmem:[#allocation11 + $0x320] sm:$0xff]
    %v1328 = vld [vmem:[#allocation11 + $0x328] sm:$0xff]
    %v1329 = vld [vmem:[#allocation11 + $0x330] sm:$0xff]
    %v1330 = vld [vmem:[#allocation11 + $0x338] sm:$0xff]
    %v1331 = vld [vmem:[#allocation11 + $0x340] sm:$0xff]
    %v1332 = vld [vmem:[#allocation11 + $0x348] sm:$0xff]
    %v1333 = vld [vmem:[#allocation11 + $0x350] sm:$0xff]
    %v1334 = vld [vmem:[#allocation11 + $0x358] sm:$0xff]
    %v1335 = vld [vmem:[#allocation11 + $0x360] sm:$0xff]
    %v1336 = vld [vmem:[#allocation11 + $0x368] sm:$0xff]
    %v1337 = vld [vmem:[#allocation11 + $0x370] sm:$0xff]
    %v1338 = vld [vmem:[#allocation11 + $0x378] sm:$0xff]
    %v1339 = vld [vmem:[#allocation11 + $0x380] sm:$0xff]
    %v1340 = vld [vmem:[#allocation11 + $0x388] sm:$0xff]
    %v1341 = vld [vmem:[#allocation11 + $0x390] sm:$0xff]
    %v1342 = vld [vmem:[#allocation11 + $0x398] sm:$0xff]
    %v1343 = vld [vmem:[#allocation11 + $0x3a0] sm:$0xff]
    %v1344 = vld [vmem:[#allocation11 + $0x3a8] sm:$0xff]
    %v1345 = vld [vmem:[#allocation11 + $0x3b0] sm:$0xff]
    %v1346 = vld [vmem:[#allocation11 + $0x3b8] sm:$0xff]
    %v1347 = vld [vmem:[#allocation11 + $0x3c0] sm:$0xff]
    %v1348 = vld [vmem:[#allocation11 + $0x3c8] sm:$0xff]
    %v1349 = vld [vmem:[#allocation11 + $0x3d0] sm:$0xff]
    %v1350 = vld [vmem:[#allocation11 + $0x3d8] sm:$0xff]
    %v1351 = vld [vmem:[#allocation11 + $0x3e0] sm:$0xff]
    %v1352 = vld [vmem:[#allocation11 + $0x3e8] sm:$0xff]
    %v1353 = vld [vmem:[#allocation11 + $0x3f0] sm:$0xff]
    %v1354 = vld [vmem:[#allocation11 + $0x3f8] sm:$0xff]
    %s1355 = scalar_lea.vmem [#allocation13], 32
    %v1356 = vld [vmem:[%s1355] ss:$8 sm:$0xf]
    %v1358 = vlaneseq
    %v1359 = vshrl.u32 %v1358, 7
    %v1360 = vsub.s32 0, %v1359
    %v1361 = vrot.slane %v1356, %v1360
    %v1362 = vlaneseq
    %v1363 = vshrl.u32 %v1362, 7
    %v1364 = vsub.s32 1, %v1363
    %v1365 = vrot.slane %v1356, %v1364
    %v1366 = vlaneseq
    %v1367 = vshrl.u32 %v1366, 7
    %v1368 = vsub.s32 2, %v1367
    %v1369 = vrot.slane %v1356, %v1368
    %v1370 = vlaneseq
    %v1371 = vshrl.u32 %v1370, 7
    %v1372 = vsub.s32 3, %v1371
    %v1373 = vrot.slane %v1356, %v1372
    %1378 = vmatprep.subr.mxu0 %v1228
    %1379 = vmatpush1.msra.mxu0 %v1227
    %1380 = vmatprep.subr.mxu0 %v1232
    %1381 = vmatpush1.msra.mxu0 %v1231
    %1382 = vmatprep.subr.mxu0 %v1236
    %1383 = vmatpush1.msra.mxu0 %v1235
    %1384 = vmatprep.subr.mxu0 %v1240
    %1385 = vmatpush1.msra.mxu0 %v1239
    %1386 = vmatprep.subr.mxu0 %v1244
    %1387 = vmatpush1.msra.mxu0 %v1243
    %1388 = vmatprep.subr.mxu0 %v1248
    %1389 = vmatpush1.msra.mxu0 %v1247
    %1390 = vmatprep.subr.mxu0 %v1252
    %1391 = vmatpush1.msra.mxu0 %v1251
    %1392 = vmatprep.subr.mxu0 %v1256
    %1393 = vmatpush1.msra.mxu0 %v1255
    %1394 = vmatprep.subr.mxu0 %v1260
    %1395 = vmatpush1.msra.mxu0 %v1259
    %1396 = vmatprep.subr.mxu0 %v1264
    %1397 = vmatpush1.msra.mxu0 %v1263
    %1398 = vmatprep.subr.mxu0 %v1268
    %1399 = vmatpush1.msra.mxu0 %v1267
    %1400 = vmatprep.subr.mxu0 %v1272
    %1401 = vmatpush1.msra.mxu0 %v1271
    %1402 = vmatprep.subr.mxu0 %v1276
    %1403 = vmatpush1.msra.mxu0 %v1275
    %1404 = vmatprep.subr.mxu0 %v1280
    %1405 = vmatpush1.msra.mxu0 %v1279
    %1406 = vmatprep.subr.mxu0 %v1284
    %1407 = vmatpush1.msra.mxu0 %v1283
    %1408 = vmatprep.subr.mxu0 %v1288
    %1409 = vmatpush1.msra.mxu0 %v1287
    %1410 = vmatprep.subr.mxu0 %v1292
    %1411 = vmatpush1.msra.mxu0 %v1291
    %1412 = vmatprep.subr.mxu0 %v1296
    %1413 = vmatpush1.msra.mxu0 %v1295
    %1414 = vmatprep.subr.mxu0 %v1300
    %1415 = vmatpush1.msra.mxu0 %v1299
    %1416 = vmatprep.subr.mxu0 %v1304
    %1417 = vmatpush1.msra.mxu0 %v1303
    %1418 = vmatprep.subr.mxu0 %v1308
    %1419 = vmatpush1.msra.mxu0 %v1307
    %1420 = vmatprep.subr.mxu0 %v1312
    %1421 = vmatpush1.msra.mxu0 %v1311
    %1422 = vmatprep.subr.mxu0 %v1316
    %1423 = vmatpush1.msra.mxu0 %v1315
    %1424 = vmatprep.subr.mxu0 %v1320
    %1425 = vmatpush1.msra.mxu0 %v1319
    %1426 = vmatprep.subr.mxu0 %v1324
    %1427 = vmatpush1.msra.mxu0 %v1323
    %1428 = vmatprep.subr.mxu0 %v1328
    %1429 = vmatpush1.msra.mxu0 %v1327
    %1430 = vmatprep.subr.mxu0 %v1332
    %1431 = vmatpush1.msra.mxu0 %v1331
    %1432 = vmatprep.subr.mxu0 %v1336
    %1433 = vmatpush1.msra.mxu0 %v1335
    %1434 = vmatprep.subr.mxu0 %v1340
    %1435 = vmatpush1.msra.mxu0 %v1339
    %1436 = vmatprep.subr.mxu0 %v1344
    %1437 = vmatpush1.msra.mxu0 %v1343
    %1438 = vmatprep.subr.mxu0 %v1348
    %1439 = vmatpush1.msra.mxu0 %v1347
    %1440 = vmatprep.subr.mxu0 %v1352
    %1441 = vmatpush1.msra.mxu0 %v1351
    %1442 = vmatprep.mubr.f32.mxu0 %v1226
    %1443 = vmatmul.mubr.f32.gmra.mrb[0].mxu0 %v1225
    %v1444 = vpop.f32.mrb[0].mxu0
    %v1445 = vadd.f32 %v1361, %v1444
    %v1446 = vpop.f32.mrb[0].mxu0
    %v1447 = vadd.f32 %v1365, %v1446
    %1448 = vdwg.mxu0
    %1449 = vmatprep.subr.mxu0 %v1230
    %1450 = vmatpush1.msra.mxu0 %v1229
    %1451 = vmatprep.subr.mxu0 %v1234
    %1452 = vmatpush1.msra.mxu0 %v1233
    %1453 = vmatprep.subr.mxu0 %v1238
    %1454 = vmatpush1.msra.mxu0 %v1237
    %1455 = vmatprep.subr.mxu0 %v1242
    %1456 = vmatpush1.msra.mxu0 %v1241
    %1457 = vmatprep.subr.mxu0 %v1246
    %1458 = vmatpush1.msra.mxu0 %v1245
    %1459 = vmatprep.subr.mxu0 %v1250
    %1460 = vmatpush1.msra.mxu0 %v1249
    %1461 = vmatprep.subr.mxu0 %v1254
    %1462 = vmatpush1.msra.mxu0 %v1253
    %1463 = vmatprep.subr.mxu0 %v1258
    %1464 = vmatpush1.msra.mxu0 %v1257
    %1465 = vmatprep.subr.mxu0 %v1262
    %1466 = vmatpush1.msra.mxu0 %v1261
    %1467 = vmatprep.subr.mxu0 %v1266
    %1468 = vmatpush1.msra.mxu0 %v1265
    %1469 = vmatprep.subr.mxu0 %v1270
    %1470 = vmatpush1.msra.mxu0 %v1269
    %1471 = vmatprep.subr.mxu0 %v1274
    %1472 = vmatpush1.msra.mxu0 %v1273
    %1473 = vmatprep.subr.mxu0 %v1278
    %1474 = vmatpush1.msra.mxu0 %v1277
    %1475 = vmatprep.subr.mxu0 %v1282
    %1476 = vmatpush1.msra.mxu0 %v1281
    %1477 = vmatprep.subr.mxu0 %v1286
    %1478 = vmatpush1.msra.mxu0 %v1285
    %1479 = vmatprep.subr.mxu0 %v1290
    %1480 = vmatpush1.msra.mxu0 %v1289
    %1481 = vmatprep.subr.mxu0 %v1294
    %1482 = vmatpush1.msra.mxu0 %v1293
    %1483 = vmatprep.subr.mxu0 %v1298
    %1484 = vmatpush1.msra.mxu0 %v1297
    %1485 = vmatprep.subr.mxu0 %v1302
    %1486 = vmatpush1.msra.mxu0 %v1301
    %1487 = vmatprep.subr.mxu0 %v1306
    %1488 = vmatpush1.msra.mxu0 %v1305
    %1489 = vmatprep.subr.mxu0 %v1310
    %1490 = vmatpush1.msra.mxu0 %v1309
    %1491 = vmatprep.subr.mxu0 %v1314
    %1492 = vmatpush1.msra.mxu0 %v1313
    %1493 = vmatprep.subr.mxu0 %v1318
    %1494 = vmatpush1.msra.mxu0 %v1317
    %1495 = vmatprep.subr.mxu0 %v1322
    %1496 = vmatpush1.msra.mxu0 %v1321
    %1497 = vmatprep.subr.mxu0 %v1326
    %1498 = vmatpush1.msra.mxu0 %v1325
    %1499 = vmatprep.subr.mxu0 %v1330
    %1500 = vmatpush1.msra.mxu0 %v1329
    %1501 = vmatprep.subr.mxu0 %v1334
    %1502 = vmatpush1.msra.mxu0 %v1333
    %1503 = vmatprep.subr.mxu0 %v1338
    %1504 = vmatpush1.msra.mxu0 %v1337
    %1505 = vmatprep.subr.mxu0 %v1342
    %1506 = vmatpush1.msra.mxu0 %v1341
    %1507 = vmatprep.subr.mxu0 %v1346
    %1508 = vmatpush1.msra.mxu0 %v1345
    %1509 = vmatprep.subr.mxu0 %v1350
    %1510 = vmatpush1.msra.mxu0 %v1349
    %1511 = vmatprep.subr.mxu0 %v1354
    %1512 = vmatpush1.msra.mxu0 %v1353
    %1513 = vmatprep.mubr.f32.mxu0 %v1226
    %1514 = vmatmul.mubr.f32.gmra.mrb[0].mxu0 %v1225
    %v1515 = vpop.f32.mrb[0].mxu0
    %v1516 = vadd.f32 %v1369, %v1515
    %v1517 = vpop.f32.mrb[0].mxu0
    %v1518 = vadd.f32 %v1373, %v1517
    %1519 = vdwg.mxu0
    %v1520 = vtanh.pop %v1445
    %v1521 = vtanh.pop %v1447
    %v1522 = vtanh.pop %v1516
    %v1523 = vtanh.pop %v1518
    %1524 = vst [vmem:[#allocation14] sm:$0xff] %v1520
    %1525 = vst [vmem:[#allocation14 + $0x8] sm:$0xff] %v1521
    %1526 = vst [vmem:[#allocation14 + $0x10] sm:$0xff] %v1522
    %1527 = vst [vmem:[#allocation14 + $0x18] sm:$0xff] %v1523
    // Predicated region
    $region58: #{tpu_custom_call.1} parent=1 // pred_check
      _
    $region59: #{tpu_custom_call.1} parent=1 // pred_check_branch
      %1529 = sbr.rel (0) target = $region61
    $region60: #{tpu_custom_call.1} parent=1 // pred_region
      %s1531 = ssub.s32 512, 512
      %1532 = vsyncadd [#allocation4], %s1531
      %s1534 = sshll.u32 [#allocation14], 4
      %s1535 = int_to_ptr.vmem [resolvable:$true] %s1534
      %1537 = dma.vmem_to_hbm [thread:$0]  %s1535, 512, %s7, [#allocation4]
    $region61: #{tpu_custom_call.1} parent=1 // pred_fallthru
      _
    // Predicated region
    $region62: #{tpu_custom_call.1} parent=1 // pred_check
      _
    $region63: #{tpu_custom_call.1} parent=1 // pred_check_branch
      %1539 = sbr.rel (0) target = $region65
    $region64: #{tpu_custom_call.1} parent=1 // pred_region
      %1540 = dma.done [#allocation4], 512
    $region65: #{tpu_custom_call.1} parent=1 // pred_fallthru
      _
    %1541 = vsyncpa [#allocation3], 1
    %1542 = vsyncpa [#allocation6], 1
    %1543 = vsyncpa [#allocation9], 1
    %1544 = vsyncpa [#allocation12], 1
    %1545 = vsyncpa [#allocation4], 1

</llo_original>
